<compile_context>
chip_gen: v7x
topology: tpu7x:2x2x1
jax: 0.10.0
libtpu: 0.0.40
codegen_flags: <defaults>
</compile_context>

<pallas_src>
import functools

import jax
import jax.numpy as jnp
from jax.experimental import pallas as pl
from jax.experimental.pallas import tpu as pltpu

NUM_BOND_TYPE = 6
NUM_BOND_DIRECTION = 3

D_PAD = 128     # emb_dim padded to the 128-lane axis (lane-dense outputs)
H_PAD = 128     # MLP hidden (2*emb_dim) padded to 128
N_ALIGN = 128   # node-count padding (full padded N stays resident in VMEM)
TILE_E = 256    # edge tile (single 'arbitrary' reduction grid axis)
T_PAD = 16      # combined edge-attr table: rows 0..7 attr1, rows 8..15 attr2


def _round_up(v, m):
    return (v + m - 1) // m * m


# ----------------------------------------------------------------------------
# Pallas kernel: whole GIN layer (edge-emb + gather + sum-aggregate + MLP)
# ----------------------------------------------------------------------------
def _gin_block_kernel(idx_ref, x_ref, tab_ref, w1_ref, b1_ref, w2_ref, b2_ref,
                      out_ref):
    ei = pl.program_id(0)          # edge tile index (reduction axis)

    @pl.when(ei == 0)
    def _init():
        out_ref[...] = jnp.zeros_like(out_ref)

    n_pad = x_ref.shape[0]
    tile_e = idx_ref.shape[1]

    idx = idx_ref[...]             # [4, tile_e] int32 (padded edges are -1)
    src_row = idx[0:1, :]
    dst_row = idx[1:2, :]
    a1_row = idx[2:3, :]
    a2_row = idx[3:4, :]

    # ---- edge embedding: Emb1(a1) + Emb2(a2) fused into one one-hot matmul --
    # sel[t, e] = (t == a1[e]) | (t == a2[e] + 8); padded edges (-1) hit only
    # the all-zero row 7, so their embedding is exactly zero.
    t_iota = jax.lax.broadcasted_iota(jnp.int32, (T_PAD, tile_e), 0)
    sel_attr = ((t_iota == a1_row) | (t_iota == (a2_row + 8))).astype(jnp.float32)
    eemb = jax.lax.dot_general(
        sel_attr, tab_ref[...],
        dimension_numbers=(((0,), (0,)), ((), ())),
        preferred_element_type=jnp.float32)            # [tile_e, D_PAD] f32, exact

    # ---- gather x[src] ------------------------------------------------------
    # One-hot selector built in-register (never touches HBM), already in the
    # orientation the MXU wants (contract over the node axis, no transpose):
    #   s_srcT[n, e] = (n == src[e]);  x_j = contract_n(s_srcT, x) -> [tile_e, D]
    node_iota = jax.lax.broadcasted_iota(jnp.int32, (n_pad, tile_e), 0)
    s_srcT = (node_iota == src_row).astype(jnp.bfloat16)
    x_j = jax.lax.dot_general(
        s_srcT, x_ref[...],
        dimension_numbers=(((0,), (0,)), ((), ())),
        preferred_element_type=jnp.float32)            # == bf16(x)[src], exact

    msg = (x_j + eemb).astype(jnp.bfloat16)            # [tile_e, D_PAD]

    # ---- scatter-add into the full resident output accumulator --------------
    # Destination one-hot is built already transposed -> plain MXU matmul
    # [n_pad, tile_e] @ [tile_e, D]; padded edges (dst = -1) match no node.
    s_dstT = (node_iota == dst_row).astype(jnp.bfloat16)
    out_ref[...] += jnp.dot(s_dstT, msg, preferred_element_type=jnp.float32)

    # ---- finalize: GIN MLP on the fully accumulated aggregation -------------
    @pl.when(ei == pl.num_programs(0) - 1)
    def _finalize():
        aggr = out_ref[...]
        h = jnp.dot(aggr, w1_ref[...],
                    preferred_element_type=jnp.float32) + b1_ref[...]
        h = jnp.maximum(h, 0.0)
        out_ref[...] = (jnp.dot(h, w2_ref[...],
                                preferred_element_type=jnp.float32)
                        + b2_ref[...]).astype(out_ref.dtype)


def gin_block_pallas(idx, x_pad, tab, w1, b1, w2, b2):
    n_pad = x_pad.shape[0]
    e_pad = idx.shape[1]
    e_tiles = e_pad // TILE_E

    flops = int(2 * e_pad * n_pad * D_PAD          # gather
                + 2 * e_pad * n_pad * D_PAD        # scatter
                + 2 * e_pad * T_PAD * D_PAD        # edge embedding
                + 2 * n_pad * D_PAD * H_PAD        # MLP layer 1
                + 2 * n_pad * H_PAD * D_PAD)       # MLP layer 2
    bytes_accessed = int(
        idx.size * 4
        + x_pad.size * x_pad.dtype.itemsize
        + (tab.size + w1.size + b1.size + w2.size + b2.size) * 4
        + n_pad * D_PAD * 4)

    return pl.pallas_call(
        _gin_block_kernel,
        out_shape=jax.ShapeDtypeStruct((n_pad, D_PAD), jnp.float32),
        grid_spec=pltpu.PrefetchScalarGridSpec(
            num_scalar_prefetch=0,
            grid=(e_tiles,),
            in_specs=[
                pl.BlockSpec((4, TILE_E), lambda k: (0, k)),        # packed idx
                pl.BlockSpec((n_pad, D_PAD), lambda k: (0, 0)),     # x (resident)
                pl.BlockSpec((T_PAD, D_PAD), lambda k: (0, 0)),     # edge tables
                pl.BlockSpec((D_PAD, H_PAD), lambda k: (0, 0)),     # w1
                pl.BlockSpec((1, H_PAD), lambda k: (0, 0)),         # b1
                pl.BlockSpec((H_PAD, D_PAD), lambda k: (0, 0)),     # w2
                pl.BlockSpec((1, D_PAD), lambda k: (0, 0)),         # b2
            ],
            out_specs=pl.BlockSpec((n_pad, D_PAD), lambda k: (0, 0)),
        ),
        compiler_params=pltpu.CompilerParams(
            dimension_semantics=("arbitrary",),
            vmem_limit_bytes=64 * 1024 * 1024),
        cost_estimate=pl.CostEstimate(
            flops=flops, transcendentals=0, bytes_accessed=bytes_accessed),
    )(idx, x_pad, tab, w1, b1, w2, b2)


# ----------------------------------------------------------------------------
# Block2D wrapper (glue: parameter init, padding / packing)
# ----------------------------------------------------------------------------
def glorot_uniform(key, shape):
    fan_in, fan_out = shape[0], shape[1]
    limit = jnp.sqrt(6.0 / (fan_in + fan_out))
    return jax.random.uniform(key, shape, jnp.float32, -limit, limit)


def init_block2d_params(key, emb_dim):
    k1, k2, k3, k4 = jax.random.split(key, 4)
    return {
        # GIN MLP: Linear(D, 2D) -> ReLU -> Linear(2D, D)
        "w1": glorot_uniform(k1, (emb_dim, 2 * emb_dim)),
        "b1": jnp.zeros((1, 2 * emb_dim), jnp.float32),
        "w2": glorot_uniform(k2, (2 * emb_dim, emb_dim)),
        "b2": jnp.zeros((1, emb_dim), jnp.float32),
        # edge-attribute embedding tables
        "edge_emb1": glorot_uniform(k3, (NUM_BOND_TYPE, emb_dim)),
        "edge_emb2": glorot_uniform(k4, (NUM_BOND_DIRECTION, emb_dim)),
    }


@functools.partial(jax.jit)
def block2d_forward(params, x, edge_index, edge_attr):
    """Block2D.forward with gnn_type='GIN'.

    x:          [N, D]  float32 node features
    edge_index: [2, E]  int32, row 0 = source node, row 1 = destination node
    edge_attr:  [E, 2]  int32 categorical bond features
    """
    n, d = x.shape
    e = edge_index.shape[1]
    n_pad = _round_up(max(n, N_ALIGN), N_ALIGN)
    e_pad = _round_up(max(e, TILE_E), TILE_E)

    # Pack (src, dst, attr1, attr2) into one lane-dense int32 array so each
    # edge tile is a single DMA.  Padded edges get -1 everywhere: their gather
    # / scatter one-hot columns are all-zero and their edge-embedding selector
    # hits only the zero padding row of the combined table.
    idx = jnp.full((4, e_pad), -1, jnp.int32)
    idx = idx.at[0, :e].set(edge_index[0].astype(jnp.int32))
    idx = idx.at[1, :e].set(edge_index[1].astype(jnp.int32))
    idx = idx.at[2, :e].set(edge_attr[:, 0].astype(jnp.int32))
    idx = idx.at[3, :e].set(edge_attr[:, 1].astype(jnp.int32))

    # Lane-dense node features (bf16 for the MXU gather/scatter path).
    x_pad = jnp.zeros((n_pad, D_PAD), jnp.bfloat16).at[:n, :d].set(
        x.astype(jnp.bfloat16))

    # Combined edge-attribute table: rows 0..5 = bond-type embedding,
    # rows 8..10 = bond-direction embedding, everything else zero.
    tab = jnp.zeros((T_PAD, D_PAD), jnp.float32)
    tab = tab.at[:NUM_BOND_TYPE, :d].set(params["edge_emb1"])
    tab = tab.at[8:8 + NUM_BOND_DIRECTION, :d].set(params["edge_emb2"])

    # Zero-padded MLP weights (padded rows/cols keep padded lanes exactly 0).
    w1 = jnp.zeros((D_PAD, H_PAD), jnp.float32).at[:d, :2 * d].set(params["w1"])
    b1 = jnp.zeros((1, H_PAD), jnp.float32).at[:, :2 * d].set(params["b1"])
    w2 = jnp.zeros((H_PAD, D_PAD), jnp.float32).at[:2 * d, :d].set(params["w2"])
    b2 = jnp.zeros((1, D_PAD), jnp.float32).at[:, :d].set(params["b2"])

    out_pad = gin_block_pallas(idx, x_pad, tab, w1, b1, w2, b2)
    return out_pad[:n, :d]


def block2d_reference(params, x, edge_index, edge_attr, bf16_messages=False):
    """Pure-JAX reference (mirrors PyG GINConv with add-aggregation).

    bf16_messages=True emulates the kernel's bf16 message path exactly
    (selectors are exact 0/1; only x and msg are bf16-rounded)."""
    src, dst = edge_index[0], edge_index[1]
    edge_emb = (params["edge_emb1"][edge_attr[:, 0]]
                + params["edge_emb2"][edge_attr[:, 1]])
    xr = x.astype(jnp.bfloat16).astype(jnp.float32) if bf16_messages else x
    msg = xr[src] + edge_emb
    if bf16_messages:
        msg = msg.astype(jnp.bfloat16).astype(jnp.float32)
    aggr = jnp.zeros_like(x).at[dst].add(msg)
    h = jnp.maximum(aggr @ params["w1"] + params["b1"], 0.0)
    return h @ params["w2"] + params["b2"]


# TODO(synk): GINBlock's exact definition is not included in the prompt; this
# implements the canonical Geom3D/GraphMVP GINConv (sum aggregation + 2-layer
# MLP + categorical edge embeddings) that Block2D('GIN') wraps.

if __name__ == "__main__":
    emb_dim = 32      # args.emb_dim
    n_nodes = 200     # pads to 256 resident node rows
    n_edges = 600     # pads to 3 edge tiles of 256 (exercises the reduction axis)

    key = jax.random.PRNGKey(0)
    kp, kx, ke, ka1, ka2 = jax.random.split(key, 5)

    params = init_block2d_params(kp, emb_dim)
    x = jax.random.normal(kx, (n_nodes, emb_dim), jnp.float32)
    edge_index = jax.random.randint(ke, (2, n_edges), 0, n_nodes, jnp.int32)
    edge_attr = jnp.stack([
        jax.random.randint(ka1, (n_edges,), 0, NUM_BOND_TYPE, jnp.int32),
        jax.random.randint(ka2, (n_edges,), 0, NUM_BOND_DIRECTION, jnp.int32),
    ], axis=1)

    out = jax.block_until_ready(block2d_forward(params, x, edge_index, edge_attr))
    assert out.shape == (n_nodes, emb_dim)

    # Tight structural check against a reference that emulates the kernel's
    # bf16 message path (only f32 summation-order differences remain).
    ref_bf16 = block2d_reference(params, x, edge_index, edge_attr,
                                 bf16_messages=True)
    assert jnp.allclose(out, ref_bf16, atol=1e-2, rtol=1e-2), (
        float(jnp.max(jnp.abs(out - ref_bf16))))

    # Loose end-to-end check against the pure-f32 module semantics
    # (bounded by bf16 rounding of x / messages).
    ref_f32 = block2d_reference(params, x, edge_index, edge_attr)
    rel_err = float(jnp.linalg.norm(out - ref_f32) / jnp.linalg.norm(ref_f32))
    assert rel_err < 2e-2, rel_err

    print("KERNEL_OK")
</pallas_src>

<mosaic_0001>
module attributes {stable_mosaic.version = 11 : i64} {
  func.func @_gin_block_kernel(%arg0: i32, %arg1: memref<4x256xi32, #tpu.memory_space<vmem>>, %arg2: memref<256x128xbf16, #tpu.memory_space<vmem>>, %arg3: memref<16x128xf32, #tpu.memory_space<vmem>>, %arg4: memref<128x128xf32, #tpu.memory_space<vmem>>, %arg5: memref<1x128xf32, #tpu.memory_space<vmem>>, %arg6: memref<128x128xf32, #tpu.memory_space<vmem>>, %arg7: memref<1x128xf32, #tpu.memory_space<vmem>>, %arg8: memref<256x128xf32, #tpu.memory_space<vmem>>) attributes {dimension_semantics = [#tpu.dimension_semantics<arbitrary>], iteration_bounds = array<i64: 3>, scalar_prefetch = 0 : i64, scratch_operands = 0 : i64, tpu.core_type = #tpu.core_type<tc>, window_params = [{transform_indices = @transform_0, window_bounds = array<i64: 4, 256>}, {pipeline_mode = #tpu.pipeline_mode<synchronous>, transform_indices = @transform_1, window_bounds = array<i64: 256, 128>}, {pipeline_mode = #tpu.pipeline_mode<synchronous>, transform_indices = @transform_2, window_bounds = array<i64: 16, 128>}, {pipeline_mode = #tpu.pipeline_mode<synchronous>, transform_indices = @transform_3, window_bounds = array<i64: 128, 128>}, {pipeline_mode = #tpu.pipeline_mode<synchronous>, transform_indices = @transform_4, window_bounds = array<i64: 1, 128>}, {pipeline_mode = #tpu.pipeline_mode<synchronous>, transform_indices = @transform_5, window_bounds = array<i64: 128, 128>}, {pipeline_mode = #tpu.pipeline_mode<synchronous>, transform_indices = @transform_6, window_bounds = array<i64: 1, 128>}, {pipeline_mode = #tpu.pipeline_mode<synchronous>, transform_indices = @transform_7, window_bounds = array<i64: 256, 128>}]} {
    %c0_i32 = arith.constant 0 : i32
    %0 = arith.cmpi eq, %arg0, %c0_i32 : i32
    %1 = arith.extui %0 : i1 to i32
    %c0_i32_0 = arith.constant 0 : i32
    %2 = arith.cmpi ne, %1, %c0_i32_0 : i32
    scf.if %2 {
      %cst_13 = arith.constant 0.000000e+00 : f32
      %42 = vector.broadcast %cst_13 : f32 to vector<256x128xf32>
      %c0_14 = arith.constant 0 : index
      %c0_15 = arith.constant 0 : index
      %43 = vector.load %arg8[%c0_14, %c0_15] : memref<256x128xf32, #tpu.memory_space<vmem>>, vector<256x128xf32>
      tpu.vector_store %arg8[%c0_14, %c0_15], %42 {strides = array<i32>} : memref<256x128xf32, #tpu.memory_space<vmem>>, vector<256x128xf32>,
    } else {
    }
    %c0 = arith.constant 0 : index
    %c0_1 = arith.constant 0 : index
    %3 = vector.load %arg1[%c0, %c0_1] : memref<4x256xi32, #tpu.memory_space<vmem>>, vector<4x256xi32>
    %4 = vector.extract_strided_slice %3 {offsets = [0, 0], sizes = [1, 256], strides = [1, 1]} : vector<4x256xi32> to vector<1x256xi32>
    %5 = vector.extract_strided_slice %3 {offsets = [1, 0], sizes = [1, 256], strides = [1, 1]} : vector<4x256xi32> to vector<1x256xi32>
    %6 = vector.extract_strided_slice %3 {offsets = [2, 0], sizes = [1, 256], strides = [1, 1]} : vector<4x256xi32> to vector<1x256xi32>
    %7 = vector.extract_strided_slice %3 {offsets = [3, 0], sizes = [1, 256], strides = [1, 1]} : vector<4x256xi32> to vector<1x256xi32>
    %8 = tpu.iota {dimensions = array<i32: 0>} : vector<16x256xi32>
    %9 = vector.broadcast %6 : vector<1x256xi32> to vector<16x256xi32>
    %10 = arith.cmpi eq, %8, %9 : vector<16x256xi32>
    %c8_i32 = arith.constant 8 : i32
    %11 = vector.broadcast %c8_i32 : i32 to vector<1x256xi32>
    %12 = arith.addi %7, %11 : vector<1x256xi32>
    %13 = vector.broadcast %12 : vector<1x256xi32> to vector<16x256xi32>
    %14 = arith.cmpi eq, %8, %13 : vector<16x256xi32>
    %15 = arith.ori %10, %14 : vector<16x256xi1>
    %16 = arith.extui %15 : vector<16x256xi1> to vector<16x256xi32>
    %17 = arith.sitofp %16 : vector<16x256xi32> to vector<16x256xf32>
    %c0_2 = arith.constant 0 : index
    %c0_3 = arith.constant 0 : index
    %18 = vector.load %arg3[%c0_2, %c0_3] : memref<16x128xf32, #tpu.memory_space<vmem>>, vector<16x128xf32>
    %cst = arith.constant dense<0.000000e+00> : vector<256x128xf32>
    %19 = tpu.matmul %17, %18, %cst {dimension_numbers = #tpu.dot_dimension_numbers<[0], [0], [1], [1], [0, 1, 1, 1], [], []>} : vector<16x256xf32>, vector<16x128xf32>, vector<256x128xf32> -> vector<256x128xf32>
    %20 = tpu.iota {dimensions = array<i32: 0>} : vector<256x256xi32>
    %21 = vector.broadcast %4 : vector<1x256xi32> to vector<256x256xi32>
    %22 = arith.cmpi eq, %20, %21 : vector<256x256xi32>
    %23 = arith.extui %22 : vector<256x256xi1> to vector<256x256xi32>
    %24 = arith.sitofp %23 : vector<256x256xi32> to vector<256x256xf32>
    %25 = arith.truncf %24 : vector<256x256xf32> to vector<256x256xbf16>
    %c0_4 = arith.constant 0 : index
    %c0_5 = arith.constant 0 : index
    %26 = vector.load %arg2[%c0_4, %c0_5] : memref<256x128xbf16, #tpu.memory_space<vmem>>, vector<256x128xbf16>
    %cst_6 = arith.constant dense<0.000000e+00> : vector<256x128xf32>
    %27 = tpu.matmul %25, %26, %cst_6 {dimension_numbers = #tpu.dot_dimension_numbers<[0], [0], [1], [1], [0, 1, 1, 1], [], []>} : vector<256x256xbf16>, vector<256x128xbf16>, vector<256x128xf32> -> vector<256x128xf32>
    %28 = arith.addf %27, %19 : vector<256x128xf32>
    %29 = arith.truncf %28 : vector<256x128xf32> to vector<256x128xbf16>
    %30 = vector.broadcast %5 : vector<1x256xi32> to vector<256x256xi32>
    %31 = arith.cmpi eq, %20, %30 : vector<256x256xi32>
    %32 = arith.extui %31 : vector<256x256xi1> to vector<256x256xi32>
    %33 = arith.sitofp %32 : vector<256x256xi32> to vector<256x256xf32>
    %34 = arith.truncf %33 : vector<256x256xf32> to vector<256x256xbf16>
    %c0_7 = arith.constant 0 : index
    %c0_8 = arith.constant 0 : index
    %35 = vector.load %arg8[%c0_7, %c0_8] : memref<256x128xf32, #tpu.memory_space<vmem>>, vector<256x128xf32>
    %cst_9 = arith.constant dense<0.000000e+00> : vector<256x128xf32>
    %36 = tpu.matmul %34, %29, %cst_9 {dimension_numbers = #tpu.dot_dimension_numbers<[1], [0], [0], [1], [0, 0, 1, 1], [], []>} : vector<256x256xbf16>, vector<256x128xbf16>, vector<256x128xf32> -> vector<256x128xf32>
    %37 = arith.addf %35, %36 : vector<256x128xf32>
    %c0_10 = arith.constant 0 : index
    %c0_11 = arith.constant 0 : index
    %38 = vector.load %arg8[%c0_10, %c0_11] : memref<256x128xf32, #tpu.memory_space<vmem>>, vector<256x128xf32>
    tpu.vector_store %arg8[%c0_10, %c0_11], %37 {strides = array<i32>} : memref<256x128xf32, #tpu.memory_space<vmem>>, vector<256x128xf32>,
    %c2_i32 = arith.constant 2 : i32
    %39 = arith.cmpi eq, %arg0, %c2_i32 : i32
    %40 = arith.extui %39 : i1 to i32
    %c0_i32_12 = arith.constant 0 : i32
    %41 = arith.cmpi ne, %40, %c0_i32_12 : i32
    scf.if %41 {
      %c0_13 = arith.constant 0 : index
      %c0_14 = arith.constant 0 : index
      %42 = vector.load %arg8[%c0_13, %c0_14] : memref<256x128xf32, #tpu.memory_space<vmem>>, vector<256x128xf32>
      %c0_15 = arith.constant 0 : index
      %c0_16 = arith.constant 0 : index
      %43 = vector.load %arg4[%c0_15, %c0_16] : memref<128x128xf32, #tpu.memory_space<vmem>>, vector<128x128xf32>
      %cst_17 = arith.constant dense<0.000000e+00> : vector<256x128xf32>
      %44 = tpu.matmul %42, %43, %cst_17 {dimension_numbers = #tpu.dot_dimension_numbers<[1], [0], [0], [1], [0, 0, 1, 1], [], []>} : vector<256x128xf32>, vector<128x128xf32>, vector<256x128xf32> -> vector<256x128xf32>
      %c0_18 = arith.constant 0 : index
      %c0_19 = arith.constant 0 : index
      %45 = vector.load %arg5[%c0_18, %c0_19] : memref<1x128xf32, #tpu.memory_space<vmem>>, vector<1x128xf32>
      %46 = vector.broadcast %45 : vector<1x128xf32> to vector<256x128xf32>
      %47 = arith.addf %44, %46 : vector<256x128xf32>
      %cst_20 = arith.constant 0.000000e+00 : f32
      %48 = vector.broadcast %cst_20 : f32 to vector<256x128xf32>
      %49 = arith.maximumf %47, %48 : vector<256x128xf32>
      %c0_21 = arith.constant 0 : index
      %c0_22 = arith.constant 0 : index
      %50 = vector.load %arg6[%c0_21, %c0_22] : memref<128x128xf32, #tpu.memory_space<vmem>>, vector<128x128xf32>
      %cst_23 = arith.constant dense<0.000000e+00> : vector<256x128xf32>
      %51 = tpu.matmul %49, %50, %cst_23 {dimension_numbers = #tpu.dot_dimension_numbers<[1], [0], [0], [1], [0, 0, 1, 1], [], []>} : vector<256x128xf32>, vector<128x128xf32>, vector<256x128xf32> -> vector<256x128xf32>
      %c0_24 = arith.constant 0 : index
      %c0_25 = arith.constant 0 : index
      %52 = vector.load %arg7[%c0_24, %c0_25] : memref<1x128xf32, #tpu.memory_space<vmem>>, vector<1x128xf32>
      %53 = vector.broadcast %52 : vector<1x128xf32> to vector<256x128xf32>
      %54 = arith.addf %51, %53 : vector<256x128xf32>
      %c0_26 = arith.constant 0 : index
      %c0_27 = arith.constant 0 : index
      %55 = vector.load %arg8[%c0_26, %c0_27] : memref<256x128xf32, #tpu.memory_space<vmem>>, vector<256x128xf32>
      tpu.vector_store %arg8[%c0_26, %c0_27], %54 {strides = array<i32>} : memref<256x128xf32, #tpu.memory_space<vmem>>, vector<256x128xf32>,
    } else {
    }
    return
  }
  func.func @transform_0(%arg0: i32) -> (i32, i32) {
    %c0_i32 = arith.constant 0 : i32
    %c0_i32_0 = arith.constant 0 : i32
    return %c0_i32, %arg0 : i32, i32
  }
  func.func @transform_1(%arg0: i32) -> (i32, i32) {
    %c0_i32 = arith.constant 0 : i32
    %c0_i32_0 = arith.constant 0 : i32
    %c0_i32_1 = arith.constant 0 : i32
    return %c0_i32, %c0_i32_0 : i32, i32
  }
  func.func @transform_2(%arg0: i32) -> (i32, i32) {
    %c0_i32 = arith.constant 0 : i32
    %c0_i32_0 = arith.constant 0 : i32
    %c0_i32_1 = arith.constant 0 : i32
    return %c0_i32, %c0_i32_0 : i32, i32
  }
  func.func @transform_3(%arg0: i32) -> (i32, i32) {
    %c0_i32 = arith.constant 0 : i32
    %c0_i32_0 = arith.constant 0 : i32
    %c0_i32_1 = arith.constant 0 : i32
    return %c0_i32, %c0_i32_0 : i32, i32
  }
  func.func @transform_4(%arg0: i32) -> (i32, i32) {
    %c0_i32 = arith.constant 0 : i32
    %c0_i32_0 = arith.constant 0 : i32
    %c0_i32_1 = arith.constant 0 : i32
    return %c0_i32, %c0_i32_0 : i32, i32
  }
  func.func @transform_5(%arg0: i32) -> (i32, i32) {
    %c0_i32 = arith.constant 0 : i32
    %c0_i32_0 = arith.constant 0 : i32
    %c0_i32_1 = arith.constant 0 : i32
    return %c0_i32, %c0_i32_0 : i32, i32
  }
  func.func @transform_6(%arg0: i32) -> (i32, i32) {
    %c0_i32 = arith.constant 0 : i32
    %c0_i32_0 = arith.constant 0 : i32
    %c0_i32_1 = arith.constant 0 : i32
    return %c0_i32, %c0_i32_0 : i32, i32
  }
  func.func @transform_7(%arg0: i32) -> (i32, i32) {
    %c0_i32 = arith.constant 0 : i32
    %c0_i32_0 = arith.constant 0 : i32
    %c0_i32_1 = arith.constant 0 : i32
    return %c0_i32, %c0_i32_0 : i32, i32
  }
}

</mosaic_0001>

<llo_original>
// kernel: block2d_forward.1
$region0: #{block2d_forward.1}
  #allocation0 [shape = 'u32[]', space=smem, size = 0x4, offset = 0x4, fixed_abs, tag = 'smem constant byte address 0x4 - core index']
  #allocation1 [shape = 'u32[144,128]{1,0:T(1,128)}', space=vmem, size = 0x12000, scoped, tag = 'internal scratch']
  %s0 = inlined_call_operand.hbm [shape: s32[4,768], index: 0, kind: input, shape index: {}]
  %s1 = inlined_call_operand.hbm [shape: bf16[256,128], index: 1, kind: input, shape index: {}]
  %s2 = inlined_call_operand.hbm [shape: f32[16,128], index: 2, kind: input, shape index: {}]
  %s3 = inlined_call_operand.hbm [shape: f32[128,128], index: 3, kind: input, shape index: {}]
  %s4 = inlined_call_operand.hbm [shape: f32[1,128], index: 4, kind: input, shape index: {}]
  %s5 = inlined_call_operand.hbm [shape: f32[128,128], index: 5, kind: input, shape index: {}]
  %s6 = inlined_call_operand.hbm [shape: f32[1,128], index: 6, kind: input, shape index: {}]
  %s7 = inlined_call_operand.hbm [shape: f32[256,128], index: 7, kind: output, shape index: {}]
  %s8 = sld [smem:[#allocation0]]
  $region97: #{block2d_forward.1} parent=0
    _
  %s10 = ssub.s32 1, %s8
  %s11 = scalar_select 0, %s10, %s8
  $region1: #{block2d_forward.1} parent=0
    #allocation2 [shape = 'u8[8192]{0}', space=vmem, size = 0x2000, scoped, tag = 'input window, operand 0']
    #allocation3 [shape = 's32[2]{0}', space=sflag, size = 0x8, scoped, tag = 'scoped memory for block2d_forward.1']
    #allocation4 [shape = 's32[2]{0}', space=sflag, size = 0x8, scoped, tag = 'scoped memory for block2d_forward.1']
    #allocation5 [shape = 'u8[65536]{0}', space=vmem, size = 0x10000, scoped, tag = 'input window, operand 1, single buffered']
    #allocation6 [shape = 's32[1]{0}', space=sflag, size = 0x4, scoped, tag = 'scoped memory for block2d_forward.1']
    #allocation7 [shape = 'u8[8192]{0}', space=vmem, size = 0x2000, scoped, tag = 'input window, operand 2, single buffered']
    #allocation8 [shape = 'u8[65536]{0}', space=vmem, size = 0x10000, scoped, tag = 'input window, operand 3, single buffered']
    #allocation9 [shape = 's32[1]{0}', space=sflag, size = 0x4, scoped, tag = 'scoped memory for block2d_forward.1']
    #allocation10 [shape = 'u8[512]{0}', space=vmem, size = 0x400, scoped, tag = 'input window, operand 4, single buffered']
    #allocation11 [shape = 'u8[65536]{0}', space=vmem, size = 0x10000, scoped, tag = 'input window, operand 5, single buffered']
    #allocation12 [shape = 's32[1]{0}', space=sflag, size = 0x4, scoped, tag = 'scoped memory for block2d_forward.1']
    #allocation13 [shape = 'u8[512]{0}', space=vmem, size = 0x400, scoped, tag = 'input window, operand 6, single buffered']
    #allocation14 [shape = 'u8[131072]{0}', space=vmem, size = 0x20000, scoped, tag = 'output window, operand 0, single buffered']
    %12 = vsyncpa [#allocation3], 0
    %s13 = scalar_lea.sflag [#allocation3], 1
    %14 = vsyncpa %s13, 0
    %15 = vsyncpa [#allocation6], 0
    %16 = vsyncpa [#allocation9], 0
    %17 = vsyncpa [#allocation12], 0
    %18 = vsyncpa [#allocation4], 0
    loop: start=0, step=1, limit=5
    $region2: #{block2d_forward.1} parent=1 // loop_pre_header
      _
    $region3: #{block2d_forward.1} parent=1 // loop_header
      %s20 = sphi 0, %s24
      %p21 = scmp.ge.s32.totalorder %s20, 5
      %s30 = sphi 0, %s32
      %s33 = sphi 0, %s30
      %s34 = sphi 0, %s33
      %s50 = sphi 0, %s34
      %s54 = sphi 0, %s54
      %s56 = sphi 0, %s54
      %s57 = sphi 0, %s56
      %s71 = sphi 0, %s57
      %s75 = sphi 0, %s75
      %s77 = sphi 0, %s75
      %s78 = sphi 0, %s77
      %s92 = sphi 0, %s78
      %s96 = sphi 0, %s96
      %s98 = sphi 0, %s96
      %s99 = sphi 0, %s98
      %s113 = sphi 0, %s99
      %s117 = sphi 0, %s117
      %s119 = sphi 0, %s117
      %s120 = sphi 0, %s119
      %s134 = sphi 0, %s120
      %s138 = sphi 0, %s138
      %s140 = sphi 0, %s138
      %s141 = sphi 0, %s140
      %s155 = sphi 0, %s141
      %s159 = sphi 0, %s159
      %s161 = sphi 0, %s159
      %s162 = sphi 0, %s161
      %s176 = sphi 0, %s162
      %s180 = sphi 0, %s180
      %s182 = sphi 0, %s180
      %s183 = sphi 0, %s182
      %s197 = sphi 0, %s183
    $region4: #{block2d_forward.1} parent=1 // loop_header_branch
      %23 = sbr.rel (%p21) target = $region8
    $region5: #{block2d_forward.1} parent=1 // loop_body
      %s25 = ssub.s32 %s20, 1
      %s26 = ssub.s32 %s20, 2
      %s27 = sadd.s32 %s20, 1
      %s28 = ssub.s32 %s20, %s27
      %p29 = scmp.eq.s32.totalorder %s28, 0
      %s31 = sadd.s32 %s30, 1
      %s32 = scalar_select %p29, %s30, %s31
      %p35 = pneg %p29
      %p36 = scmp.eq.s32.totalorder %s20, 2
      %p37 = por %p35, %p36
      %p38 = scmp.ne.s32.totalorder %s30, %s33
      %p39 = scmp.eq.s32.totalorder %s20, 0
      %p40 = por %p38, %p39
      %p41 = scmp.ne.s32.totalorder %s30, %s33
      %p42 = scmp.eq.s32.totalorder %s25, 2
      %p43 = por %p41, %p42
      %p44 = scmp.ne.s32.totalorder %s33, %s34
      %p45 = scmp.eq.s32.totalorder %s25, 0
      %p46 = por %p44, %p45
      %p47 = scmp.ne.s32.totalorder %s33, %s34
      %p48 = scmp.eq.s32.totalorder %s26, 2
      %p49 = por %p47, %p48
      %p51 = scmp.ne.s32.totalorder %s34, %s50
      %p52 = scmp.eq.s32.totalorder %s26, 0
      %p53 = por %p51, %p52
      %s55 = sadd.s32 %s54, 1
      %p58 = scmp.eq.s32.totalorder %s20, 2
      %p59 = scmp.ne.s32.totalorder %s54, %s56
      %p60 = scmp.eq.s32.totalorder %s20, 0
      %p61 = por %p59, %p60
      %p62 = scmp.ne.s32.totalorder %s54, %s56
      %p63 = scmp.eq.s32.totalorder %s25, 2
      %p64 = por %p62, %p63
      %p65 = scmp.ne.s32.totalorder %s56, %s57
      %p66 = scmp.eq.s32.totalorder %s25, 0
      %p67 = por %p65, %p66
      %p68 = scmp.ne.s32.totalorder %s56, %s57
      %p69 = scmp.eq.s32.totalorder %s26, 2
      %p70 = por %p68, %p69
      %p72 = scmp.ne.s32.totalorder %s57, %s71
      %p73 = scmp.eq.s32.totalorder %s26, 0
      %p74 = por %p72, %p73
      %s76 = sadd.s32 %s75, 1
      %p79 = scmp.eq.s32.totalorder %s20, 2
      %p80 = scmp.ne.s32.totalorder %s75, %s77
      %p81 = scmp.eq.s32.totalorder %s20, 0
      %p82 = por %p80, %p81
      %p83 = scmp.ne.s32.totalorder %s75, %s77
      %p84 = scmp.eq.s32.totalorder %s25, 2
      %p85 = por %p83, %p84
      %p86 = scmp.ne.s32.totalorder %s77, %s78
      %p87 = scmp.eq.s32.totalorder %s25, 0
      %p88 = por %p86, %p87
      %p89 = scmp.ne.s32.totalorder %s77, %s78
      %p90 = scmp.eq.s32.totalorder %s26, 2
      %p91 = por %p89, %p90
      %p93 = scmp.ne.s32.totalorder %s78, %s92
      %p94 = scmp.eq.s32.totalorder %s26, 0
      %p95 = por %p93, %p94
      %s97 = sadd.s32 %s96, 1
      %p100 = scmp.eq.s32.totalorder %s20, 2
      %p101 = scmp.ne.s32.totalorder %s96, %s98
      %p102 = scmp.eq.s32.totalorder %s20, 0
      %p103 = por %p101, %p102
      %p104 = scmp.ne.s32.totalorder %s96, %s98
      %p105 = scmp.eq.s32.totalorder %s25, 2
      %p106 = por %p104, %p105
      %p107 = scmp.ne.s32.totalorder %s98, %s99
      %p108 = scmp.eq.s32.totalorder %s25, 0
      %p109 = por %p107, %p108
      %p110 = scmp.ne.s32.totalorder %s98, %s99
      %p111 = scmp.eq.s32.totalorder %s26, 2
      %p112 = por %p110, %p111
      %p114 = scmp.ne.s32.totalorder %s99, %s113
      %p115 = scmp.eq.s32.totalorder %s26, 0
      %p116 = por %p114, %p115
      %s118 = sadd.s32 %s117, 1
      %p121 = scmp.eq.s32.totalorder %s20, 2
      %p122 = scmp.ne.s32.totalorder %s117, %s119
      %p123 = scmp.eq.s32.totalorder %s20, 0
      %p124 = por %p122, %p123
      %p125 = scmp.ne.s32.totalorder %s117, %s119
      %p126 = scmp.eq.s32.totalorder %s25, 2
      %p127 = por %p125, %p126
      %p128 = scmp.ne.s32.totalorder %s119, %s120
      %p129 = scmp.eq.s32.totalorder %s25, 0
      %p130 = por %p128, %p129
      %p131 = scmp.ne.s32.totalorder %s119, %s120
      %p132 = scmp.eq.s32.totalorder %s26, 2
      %p133 = por %p131, %p132
      %p135 = scmp.ne.s32.totalorder %s120, %s134
      %p136 = scmp.eq.s32.totalorder %s26, 0
      %p137 = por %p135, %p136
      %s139 = sadd.s32 %s138, 1
      %p142 = scmp.eq.s32.totalorder %s20, 2
      %p143 = scmp.ne.s32.totalorder %s138, %s140
      %p144 = scmp.eq.s32.totalorder %s20, 0
      %p145 = por %p143, %p144
      %p146 = scmp.ne.s32.totalorder %s138, %s140
      %p147 = scmp.eq.s32.totalorder %s25, 2
      %p148 = por %p146, %p147
      %p149 = scmp.ne.s32.totalorder %s140, %s141
      %p150 = scmp.eq.s32.totalorder %s25, 0
      %p151 = por %p149, %p150
      %p152 = scmp.ne.s32.totalorder %s140, %s141
      %p153 = scmp.eq.s32.totalorder %s26, 2
      %p154 = por %p152, %p153
      %p156 = scmp.ne.s32.totalorder %s141, %s155
      %p157 = scmp.eq.s32.totalorder %s26, 0
      %p158 = por %p156, %p157
      %s160 = sadd.s32 %s159, 1
      %p163 = scmp.eq.s32.totalorder %s20, 2
      %p164 = scmp.ne.s32.totalorder %s159, %s161
      %p165 = scmp.eq.s32.totalorder %s20, 0
      %p166 = por %p164, %p165
      %p167 = scmp.ne.s32.totalorder %s159, %s161
      %p168 = scmp.eq.s32.totalorder %s25, 2
      %p169 = por %p167, %p168
      %p170 = scmp.ne.s32.totalorder %s161, %s162
      %p171 = scmp.eq.s32.totalorder %s25, 0
      %p172 = por %p170, %p171
      %p173 = scmp.ne.s32.totalorder %s161, %s162
      %p174 = scmp.eq.s32.totalorder %s26, 2
      %p175 = por %p173, %p174
      %p177 = scmp.ne.s32.totalorder %s162, %s176
      %p178 = scmp.eq.s32.totalorder %s26, 0
      %p179 = por %p177, %p178
      %s181 = sadd.s32 %s180, 1
      %p184 = scmp.eq.s32.totalorder %s20, 2
      %p185 = scmp.ne.s32.totalorder %s180, %s182
      %p186 = scmp.eq.s32.totalorder %s20, 0
      %p187 = por %p185, %p186
      %p188 = scmp.ne.s32.totalorder %s180, %s182
      %p189 = scmp.eq.s32.totalorder %s25, 2
      %p190 = por %p188, %p189
      %p191 = scmp.ne.s32.totalorder %s182, %s183
      %p192 = scmp.eq.s32.totalorder %s25, 0
      %p193 = por %p191, %p192
      %p194 = scmp.ne.s32.totalorder %s182, %s183
      %p195 = scmp.eq.s32.totalorder %s26, 2
      %p196 = por %p194, %p195
      %p198 = scmp.ne.s32.totalorder %s183, %s197
      %p199 = scmp.eq.s32.totalorder %s26, 0
      %p200 = por %p198, %p199
      %p201 = scmp.le.s32.totalorder 1, %s20
      %p202 = scmp.lt.s32.totalorder %s20, 4
      %p203 = pnand %p201, %p202
      %p204 = pneg %p203
      // Predicated region
      $region9: #{block2d_forward.1} parent=5 // pred_check
        _
      $region10: #{block2d_forward.1} parent=5 // pred_check_branch
        %206 = sbr.rel (%p203) target = $region12
      $region11: #{block2d_forward.1} parent=5 // pred_region
        %s207 = ssub.s32 %s20, 1
        // Predicated region
        $region13: #{block2d_forward.1} parent=11 // pred_check
          %p208 = pneg %p67
        $region14: #{block2d_forward.1} parent=11 // pred_check_branch
          %210 = sbr.rel (%p208) target = $region16
        $region15: #{block2d_forward.1} parent=11 // pred_region
          %s212 = ssub.s32 2048, 2048
          %213 = vsyncadd [#allocation6], %s212
          %s214 = sshll.u32 [#allocation5], 4
          %s215 = int_to_ptr.vmem [resolvable:$true] %s214
          %220 = dma.hbm_to_vmem [thread:$0]  %s1, 2048, %s215, [#allocation6], 64, 64, 4
        $region16: #{block2d_forward.1} parent=11 // pred_fallthru
          _
        // Predicated region
        $region17: #{block2d_forward.1} parent=11 // pred_check
          %p221 = pneg %p88
        $region18: #{block2d_forward.1} parent=11 // pred_check_branch
          %223 = sbr.rel (%p221) target = $region20
        $region19: #{block2d_forward.1} parent=11 // pred_region
          %s225 = ssub.s32 256, 256
          %226 = vsyncadd [#allocation6], %s225
          %s227 = sshll.u32 [#allocation7], 4
          %s228 = int_to_ptr.vmem [resolvable:$true] %s227
          %233 = dma.hbm_to_vmem [thread:$0]  %s2, 256, %s228, [#allocation6], 128, 128, 8
        $region20: #{block2d_forward.1} parent=11 // pred_fallthru
          _
        // Predicated region
        $region21: #{block2d_forward.1} parent=11 // pred_check
          %p234 = pneg %p109
        $region22: #{block2d_forward.1} parent=11 // pred_check_branch
          %236 = sbr.rel (%p234) target = $region24
        $region23: #{block2d_forward.1} parent=11 // pred_region
          %s238 = ssub.s32 2048, 2048
          %239 = vsyncadd [#allocation9], %s238
          %s240 = sshll.u32 [#allocation8], 4
          %s241 = int_to_ptr.vmem [resolvable:$true] %s240
          %246 = dma.hbm_to_vmem [thread:$0]  %s3, 2048, %s241, [#allocation9], 128, 128, 8
        $region24: #{block2d_forward.1} parent=11 // pred_fallthru
          _
        // Predicated region
        $region25: #{block2d_forward.1} parent=11 // pred_check
          %p247 = pneg %p130
        $region26: #{block2d_forward.1} parent=11 // pred_check_branch
          %249 = sbr.rel (%p247) target = $region28
        $region27: #{block2d_forward.1} parent=11 // pred_region
          %s251 = ssub.s32 16, 16
          %252 = vsyncadd [#allocation9], %s251
          %s254 = sshll.u32 [#allocation10], 4
          %s255 = int_to_ptr.vmem [resolvable:$true] %s254
          %257 = dma.hbm_to_vmem [thread:$0]  %s4, 16, %s255, [#allocation9]
        $region28: #{block2d_forward.1} parent=11 // pred_fallthru
          _
        // Predicated region
        $region29: #{block2d_forward.1} parent=11 // pred_check
          %p258 = pneg %p151
        $region30: #{block2d_forward.1} parent=11 // pred_check_branch
          %260 = sbr.rel (%p258) target = $region32
        $region31: #{block2d_forward.1} parent=11 // pred_region
          %s262 = ssub.s32 2048, 2048
          %263 = vsyncadd [#allocation12], %s262
          %s264 = sshll.u32 [#allocation11], 4
          %s265 = int_to_ptr.vmem [resolvable:$true] %s264
          %270 = dma.hbm_to_vmem [thread:$0]  %s5, 2048, %s265, [#allocation12], 128, 128, 8
        $region32: #{block2d_forward.1} parent=11 // pred_fallthru
          _
        // Predicated region
        $region33: #{block2d_forward.1} parent=11 // pred_check
          %p271 = pneg %p172
        $region34: #{block2d_forward.1} parent=11 // pred_check_branch
          %273 = sbr.rel (%p271) target = $region36
        $region35: #{block2d_forward.1} parent=11 // pred_region
          %s275 = ssub.s32 16, 16
          %276 = vsyncadd [#allocation12], %s275
          %s278 = sshll.u32 [#allocation13], 4
          %s279 = int_to_ptr.vmem [resolvable:$true] %s278
          %281 = dma.hbm_to_vmem [thread:$0]  %s6, 16, %s279, [#allocation12]
        $region36: #{block2d_forward.1} parent=11 // pred_fallthru
          _
      $region12: #{block2d_forward.1} parent=5 // pred_fallthru
        _
      %p282 = scmp.lt.s32.totalorder %s20, 3
      // Predicated region
      $region37: #{block2d_forward.1} parent=5 // pred_check
        %p283 = pneg %p282
      $region38: #{block2d_forward.1} parent=5 // pred_check_branch
        %285 = sbr.rel (%p283) target = $region40
      $region39: #{block2d_forward.1} parent=5 // pred_region
        // Predicated region
        $region41: #{block2d_forward.1} parent=39 // pred_check
          %p286 = pneg %p40
        $region42: #{block2d_forward.1} parent=39 // pred_check_branch
          %288 = sbr.rel (%p286) target = $region44
        $region43: #{block2d_forward.1} parent=39 // pred_region
          %s289 = sand.u32 %s30, 1
          %s290 = scalar_lea.sflag [#allocation3], %s289
          %s291 = sand.u32 %s30, 1
          %s292 = smul.addr %s291, 8
          %s293 = scalar_lea.vmem [#allocation2], %s292
          %s294 = smul.u32 2, %s20
          %s296 = ssub.s32 128, 128
          %297 = vsyncadd %s290, %s296
          %s298 = smul.addr %s294, 64
          %s299 = scalar_lea.hbm %s0, %s298
          %s301 = sshll.u32 %s293, 4
          %s302 = int_to_ptr.vmem [resolvable:$true] %s301
          %304 = dma.hbm_to_vmem [thread:$0]  %s299, 128, %s302, %s290
        $region44: #{block2d_forward.1} parent=39 // pred_fallthru
          _
      $region40: #{block2d_forward.1} parent=5 // pred_fallthru
        _
      %p305 = scmp.le.s32.totalorder 1, %s20
      %p306 = scmp.lt.s32.totalorder %s20, 4
      %p307 = pnand %p305, %p306
      %p308 = pneg %p307
      // Predicated region
      $region45: #{block2d_forward.1} parent=5 // pred_check
        _
      $region46: #{block2d_forward.1} parent=5 // pred_check_branch
        %310 = sbr.rel (%p307) target = $region48
      $region47: #{block2d_forward.1} parent=5 // pred_region
        %s311 = ssub.s32 %s20, 1
        %s312 = sand.u32 %s33, 1
        %s313 = scalar_lea.sflag [#allocation3], %s312
        %s314 = sand.u32 %s33, 1
        %s315 = smul.addr %s314, 8
        %s316 = scalar_lea.vmem [#allocation2], %s315
        // Predicated region
        $region49: #{block2d_forward.1} parent=47 // pred_check
          %p317 = pneg %p46
        $region50: #{block2d_forward.1} parent=47 // pred_check_branch
          %319 = sbr.rel (%p317) target = $region52
        $region51: #{block2d_forward.1} parent=47 // pred_region
          %320 = dma.done %s313, 128
        $region52: #{block2d_forward.1} parent=47 // pred_fallthru
          _
        // Predicated region
        $region53: #{block2d_forward.1} parent=47 // pred_check
          %p321 = pneg %p67
        $region54: #{block2d_forward.1} parent=47 // pred_check_branch
          %323 = sbr.rel (%p321) target = $region56
        $region55: #{block2d_forward.1} parent=47 // pred_region
          %324 = dma.done [#allocation6], 2048
        $region56: #{block2d_forward.1} parent=47 // pred_fallthru
          _
        // Predicated region
        $region57: #{block2d_forward.1} parent=47 // pred_check
          %p325 = pneg %p88
        $region58: #{block2d_forward.1} parent=47 // pred_check_branch
          %327 = sbr.rel (%p325) target = $region60
        $region59: #{block2d_forward.1} parent=47 // pred_region
          %328 = dma.done [#allocation6], 256
        $region60: #{block2d_forward.1} parent=47 // pred_fallthru
          _
        // Predicated region
        $region61: #{block2d_forward.1} parent=47 // pred_check
          %p329 = pneg %p109
        $region62: #{block2d_forward.1} parent=47 // pred_check_branch
          %331 = sbr.rel (%p329) target = $region64
        $region63: #{block2d_forward.1} parent=47 // pred_region
          %332 = dma.done [#allocation9], 2048
        $region64: #{block2d_forward.1} parent=47 // pred_fallthru
          _
        // Predicated region
        $region65: #{block2d_forward.1} parent=47 // pred_check
          %p333 = pneg %p130
        $region66: #{block2d_forward.1} parent=47 // pred_check_branch
          %335 = sbr.rel (%p333) target = $region68
        $region67: #{block2d_forward.1} parent=47 // pred_region
          %336 = dma.done [#allocation9], 16
        $region68: #{block2d_forward.1} parent=47 // pred_fallthru
          _
        // Predicated region
        $region69: #{block2d_forward.1} parent=47 // pred_check
          %p337 = pneg %p151
        $region70: #{block2d_forward.1} parent=47 // pred_check_branch
          %339 = sbr.rel (%p337) target = $region72
        $region71: #{block2d_forward.1} parent=47 // pred_region
          %340 = dma.done [#allocation12], 2048
        $region72: #{block2d_forward.1} parent=47 // pred_fallthru
          _
        // Predicated region
        $region73: #{block2d_forward.1} parent=47 // pred_check
          %p341 = pneg %p172
        $region74: #{block2d_forward.1} parent=47 // pred_check_branch
          %343 = sbr.rel (%p341) target = $region76
        $region75: #{block2d_forward.1} parent=47 // pred_region
          %344 = dma.done [#allocation12], 16
        $region76: #{block2d_forward.1} parent=47 // pred_fallthru
          _
        %s345 = sand.u32 %s33, 1
        %s346 = scalar_lea.sflag [#allocation3], %s345
        %s347 = sand.u32 %s33, 1
        %s348 = smul.addr %s347, 8
        %s349 = scalar_lea.vmem [#allocation2], %s348
        %p350 = pneg %p46
        %p351 = pneg %p43
        %p352 = pneg %p67
        %p353 = pneg %p64
        %p354 = pneg %p88
        %p355 = pneg %p85
        %p356 = pneg %p109
        %p357 = pneg %p106
        %p358 = pneg %p130
        %p359 = pneg %p127
        %p360 = pneg %p151
        %p361 = pneg %p148
        %p362 = pneg %p172
        %p363 = pneg %p169
        %p364 = pneg %p193
        %p365 = pneg %p190
        %s366 = smul.u32 2, %s25
        %p368 = scmp.eq.s32.totalorder %s25, 0
        // Predicated region
        $region77: #{block2d_forward.1} parent=47 // pred_check
          %p369 = pneg %p368
        $region78: #{block2d_forward.1} parent=47 // pred_check_branch
          %371 = sbr.rel (%p369) target = $region80
        $region79: #{block2d_forward.1} parent=47 // pred_region
          %372 = vst [vmem:[#allocation14] sm:$0xff] 0.0
          %373 = vst [vmem:[#allocation14 + $0x8] sm:$0xff] 0.0
          %374 = vst [vmem:[#allocation14 + $0x10] sm:$0xff] 0.0
          %375 = vst [vmem:[#allocation14 + $0x18] sm:$0xff] 0.0
          %376 = vst [vmem:[#allocation14 + $0x20] sm:$0xff] 0.0
          %377 = vst [vmem:[#allocation14 + $0x28] sm:$0xff] 0.0
          %378 = vst [vmem:[#allocation14 + $0x30] sm:$0xff] 0.0
          %379 = vst [vmem:[#allocation14 + $0x38] sm:$0xff] 0.0
          %380 = vst [vmem:[#allocation14 + $0x40] sm:$0xff] 0.0
          %381 = vst [vmem:[#allocation14 + $0x48] sm:$0xff] 0.0
          %382 = vst [vmem:[#allocation14 + $0x50] sm:$0xff] 0.0
          %383 = vst [vmem:[#allocation14 + $0x58] sm:$0xff] 0.0
          %384 = vst [vmem:[#allocation14 + $0x60] sm:$0xff] 0.0
          %385 = vst [vmem:[#allocation14 + $0x68] sm:$0xff] 0.0
          %386 = vst [vmem:[#allocation14 + $0x70] sm:$0xff] 0.0
          %387 = vst [vmem:[#allocation14 + $0x78] sm:$0xff] 0.0
          %388 = vst [vmem:[#allocation14 + $0x80] sm:$0xff] 0.0
          %389 = vst [vmem:[#allocation14 + $0x88] sm:$0xff] 0.0
          %390 = vst [vmem:[#allocation14 + $0x90] sm:$0xff] 0.0
          %391 = vst [vmem:[#allocation14 + $0x98] sm:$0xff] 0.0
          %392 = vst [vmem:[#allocation14 + $0xa0] sm:$0xff] 0.0
          %393 = vst [vmem:[#allocation14 + $0xa8] sm:$0xff] 0.0
          %394 = vst [vmem:[#allocation14 + $0xb0] sm:$0xff] 0.0
          %395 = vst [vmem:[#allocation14 + $0xb8] sm:$0xff] 0.0
          %396 = vst [vmem:[#allocation14 + $0xc0] sm:$0xff] 0.0
          %397 = vst [vmem:[#allocation14 + $0xc8] sm:$0xff] 0.0
          %398 = vst [vmem:[#allocation14 + $0xd0] sm:$0xff] 0.0
          %399 = vst [vmem:[#allocation14 + $0xd8] sm:$0xff] 0.0
          %400 = vst [vmem:[#allocation14 + $0xe0] sm:$0xff] 0.0
          %401 = vst [vmem:[#allocation14 + $0xe8] sm:$0xff] 0.0
          %402 = vst [vmem:[#allocation14 + $0xf0] sm:$0xff] 0.0
          %403 = vst [vmem:[#allocation14 + $0xf8] sm:$0xff] 0.0
        $region80: #{block2d_forward.1} parent=47 // pred_fallthru
          _
        %v404 = vld [vmem:[%s316] sm:$0xff]
        %v405 = vlaneseq
        %v406 = vshrl.u32 %v405, 7
        %v407 = vadd.s32 %v406, 8
        %v408 = vlaneseq
        %v409 = vshrl.u32 %v408, 7
        %v410 = vsub.s32 2, %v409
        %v411 = vrot.slane %v404, %v410
        %v412 = vlaneseq
        %v413 = vshrl.u32 %v412, 7
        %v414 = vsub.s32 6, %v413
        %v415 = vrot.slane %v404, %v414
        %v416 = vlaneseq
        %v417 = vshrl.u32 %v416, 7
        %v418 = vsub.s32 2, %v417
        %v419 = vrot.slane %v411, %v418
        %v420 = vlaneseq
        %v421 = vshrl.u32 %v420, 7
        %v422 = vsub.s32 2, %v421
        %v423 = vrot.slane %v415, %v422
        %vm424 = vcmp.eq.s32.totalorder %v406, %v419
        %vm425 = vcmp.eq.s32.totalorder %v406, %v423
        %vm426 = vcmp.eq.s32.totalorder %v407, %v419
        %vm427 = vcmp.eq.s32.totalorder %v407, %v423
        %v428 = vadd.s32 %v404, 8
        %v429 = vlaneseq
        %v430 = vshrl.u32 %v429, 7
        %v431 = vsub.s32 3, %v430
        %v432 = vrot.slane %v428, %v431
        %v433 = vlaneseq
        %v434 = vshrl.u32 %v433, 7
        %v435 = vsub.s32 7, %v434
        %v436 = vrot.slane %v428, %v435
        %v437 = vlaneseq
        %v438 = vshrl.u32 %v437, 7
        %v439 = vsub.s32 3, %v438
        %v440 = vrot.slane %v432, %v439
        %v441 = vlaneseq
        %v442 = vshrl.u32 %v441, 7
        %v443 = vsub.s32 3, %v442
        %v444 = vrot.slane %v436, %v443
        %vm445 = vcmp.eq.s32.totalorder %v406, %v440
        %vm446 = vcmp.eq.s32.totalorder %v406, %v444
        %vm447 = vcmp.eq.s32.totalorder %v407, %v440
        %vm448 = vcmp.eq.s32.totalorder %v407, %v444
        %vm449 = vmor %vm424, %vm445
        %vm450 = vmor %vm425, %vm446
        %vm451 = vmor %vm426, %vm447
        %vm452 = vmor %vm427, %vm448
        %v453 = vsel %vm449, 1, 0
        %v454 = vsel %vm450, 1, 0
        %v455 = vsel %vm451, 1, 0
        %v456 = vsel %vm452, 1, 0
        %v457 = vcvt.s32.f32 %v453
        %v458 = vcvt.s32.f32 %v454
        %v459 = vcvt.s32.f32 %v455
        %v460 = vcvt.s32.f32 %v456
        %v461 = vld [vmem:[#allocation7] sm:$0xff]
        %v462 = vld [vmem:[#allocation7 + $0x8] sm:$0xff]
        %463 = vxpose.xlu0.b32.start [1/16] %v457, 128
        %464 = vxpose.xlu0.b32.cont [2/16] %v459, 128
        %465 = vxpose.xlu0.b32.cont [3/16] 0.0, 128
        %466 = vxpose.xlu0.b32.cont [4/16] 0.0, 128
        %467 = vxpose.xlu0.b32.cont [5/16] 0.0, 128
        %468 = vxpose.xlu0.b32.cont [6/16] 0.0, 128
        %469 = vxpose.xlu0.b32.cont [7/16] 0.0, 128
        %470 = vxpose.xlu0.b32.cont [8/16] 0.0, 128
        %471 = vxpose.xlu0.b32.cont [9/16] 0.0, 128
        %472 = vxpose.xlu0.b32.cont [10/16] 0.0, 128
        %473 = vxpose.xlu0.b32.cont [11/16] 0.0, 128
        %474 = vxpose.xlu0.b32.cont [12/16] 0.0, 128
        %475 = vxpose.xlu0.b32.cont [13/16] 0.0, 128
        %476 = vxpose.xlu0.b32.cont [14/16] 0.0, 128
        %477 = vxpose.xlu0.b32.cont [15/16] 0.0, 128
        %478 = vxpose.xlu0.b32.end [16/16] 0.0, 128
        %v479 = vpop.trf.xlu0
        %v480 = vpop.trf.xlu0
        %v481 = vpop.trf.xlu0
        %v482 = vpop.trf.xlu0
        %v483 = vpop.trf.xlu0
        %v484 = vpop.trf.xlu0
        %v485 = vpop.trf.xlu0
        %v486 = vpop.trf.xlu0
        %v487 = vpop.trf.xlu0
        %v488 = vpop.trf.xlu0
        %v489 = vpop.trf.xlu0
        %v490 = vpop.trf.xlu0
        %v491 = vpop.trf.xlu0
        %v492 = vpop.trf.xlu0
        %v493 = vpop.trf.xlu0
        %v494 = vpop.trf.xlu0
        %495 = vxpose.xlu0.b32.start [1/16] %v458, 128
        %496 = vxpose.xlu0.b32.cont [2/16] %v460, 128
        %497 = vxpose.xlu0.b32.cont [3/16] 0.0, 128
        %498 = vxpose.xlu0.b32.cont [4/16] 0.0, 128
        %499 = vxpose.xlu0.b32.cont [5/16] 0.0, 128
        %500 = vxpose.xlu0.b32.cont [6/16] 0.0, 128
        %501 = vxpose.xlu0.b32.cont [7/16] 0.0, 128
        %502 = vxpose.xlu0.b32.cont [8/16] 0.0, 128
        %503 = vxpose.xlu0.b32.cont [9/16] 0.0, 128
        %504 = vxpose.xlu0.b32.cont [10/16] 0.0, 128
        %505 = vxpose.xlu0.b32.cont [11/16] 0.0, 128
        %506 = vxpose.xlu0.b32.cont [12/16] 0.0, 128
        %507 = vxpose.xlu0.b32.cont [13/16] 0.0, 128
        %508 = vxpose.xlu0.b32.cont [14/16] 0.0, 128
        %509 = vxpose.xlu0.b32.cont [15/16] 0.0, 128
        %510 = vxpose.xlu0.b32.end [16/16] 0.0, 128
        %v511 = vpop.trf.xlu0
        %v512 = vpop.trf.xlu0
        %v513 = vpop.trf.xlu0
        %v514 = vpop.trf.xlu0
        %v515 = vpop.trf.xlu0
        %v516 = vpop.trf.xlu0
        %v517 = vpop.trf.xlu0
        %v518 = vpop.trf.xlu0
        %v519 = vpop.trf.xlu0
        %v520 = vpop.trf.xlu0
        %v521 = vpop.trf.xlu0
        %v522 = vpop.trf.xlu0
        %v523 = vpop.trf.xlu0
        %v524 = vpop.trf.xlu0
        %v525 = vpop.trf.xlu0
        %v526 = vpop.trf.xlu0
        %vm527 = vcmask 130048
        %v529 = vsel %vm527, %v479, 0
        %v532 = vsel %vm527, %v480, 0
        %v535 = vsel %vm527, %v481, 0
        %v538 = vsel %vm527, %v482, 0
        %v541 = vsel %vm527, %v483, 0
        %v544 = vsel %vm527, %v484, 0
        %v547 = vsel %vm527, %v485, 0
        %v550 = vsel %vm527, %v486, 0
        %v553 = vsel %vm527, %v487, 0
        %v556 = vsel %vm527, %v488, 0
        %v559 = vsel %vm527, %v489, 0
        %v562 = vsel %vm527, %v490, 0
        %v565 = vsel %vm527, %v491, 0
        %v568 = vsel %vm527, %v492, 0
        %v571 = vsel %vm527, %v493, 0
        %v574 = vsel %vm527, %v494, 0
        %v577 = vsel %vm527, %v511, 0
        %v580 = vsel %vm527, %v512, 0
        %v583 = vsel %vm527, %v513, 0
        %v586 = vsel %vm527, %v514, 0
        %v589 = vsel %vm527, %v515, 0
        %v592 = vsel %vm527, %v516, 0
        %v595 = vsel %vm527, %v517, 0
        %v598 = vsel %vm527, %v518, 0
        %v601 = vsel %vm527, %v519, 0
        %v604 = vsel %vm527, %v520, 0
        %v607 = vsel %vm527, %v521, 0
        %v610 = vsel %vm527, %v522, 0
        %v613 = vsel %vm527, %v523, 0
        %v616 = vsel %vm527, %v524, 0
        %v619 = vsel %vm527, %v525, 0
        %v622 = vsel %vm527, %v526, 0
        %624 = vmatprep.subr.mxu0 0.0
        %625 = vmatpush1.msra.mxu0 %v461
        %626 = vmatprep.subr.mxu0 0.0
        %627 = vmatpush1.msra.mxu0 %v462
        %628 = vmatprep.subr.mxu0 0.0
        %629 = vmatpush1.msra.mxu0 0.0
        %630 = vmatprep.subr.mxu0 0.0
        %631 = vmatpush1.msra.mxu0 0.0
        %632 = vmatprep.subr.mxu0 0.0
        %633 = vmatpush1.msra.mxu0 0.0
        %634 = vmatprep.subr.mxu0 0.0
        %635 = vmatpush1.msra.mxu0 0.0
        %636 = vmatprep.subr.mxu0 0.0
        %637 = vmatpush1.msra.mxu0 0.0
        %638 = vmatprep.subr.mxu0 0.0
        %639 = vmatpush1.msra.mxu0 0.0
        %640 = vmatprep.subr.mxu0 0.0
        %641 = vmatpush1.msra.mxu0 0.0
        %642 = vmatprep.subr.mxu0 0.0
        %643 = vmatpush1.msra.mxu0 0.0
        %644 = vmatprep.subr.mxu0 0.0
        %645 = vmatpush1.msra.mxu0 0.0
        %646 = vmatprep.subr.mxu0 0.0
        %647 = vmatpush1.msra.mxu0 0.0
        %648 = vmatprep.subr.mxu0 0.0
        %649 = vmatpush1.msra.mxu0 0.0
        %650 = vmatprep.subr.mxu0 0.0
        %651 = vmatpush1.msra.mxu0 0.0
        %652 = vmatprep.subr.mxu0 0.0
        %653 = vmatpush1.msra.mxu0 0.0
        %654 = vmatprep.subr.mxu0 0.0
        %655 = vmatpush1.msra.mxu0 0.0
        %656 = vmatprep.subr.mxu0 0.0
        %657 = vmatpush1.msra.mxu0 0.0
        %658 = vmatprep.subr.mxu0 0.0
        %659 = vmatpush1.msra.mxu0 0.0
        %660 = vmatprep.subr.mxu0 0.0
        %661 = vmatpush1.msra.mxu0 0.0
        %662 = vmatprep.subr.mxu0 0.0
        %663 = vmatpush1.msra.mxu0 0.0
        %664 = vmatprep.subr.mxu0 0.0
        %665 = vmatpush1.msra.mxu0 0.0
        %666 = vmatprep.subr.mxu0 0.0
        %667 = vmatpush1.msra.mxu0 0.0
        %668 = vmatprep.subr.mxu0 0.0
        %669 = vmatpush1.msra.mxu0 0.0
        %670 = vmatprep.subr.mxu0 0.0
        %671 = vmatpush1.msra.mxu0 0.0
        %672 = vmatprep.subr.mxu0 0.0
        %673 = vmatpush1.msra.mxu0 0.0
        %674 = vmatprep.subr.mxu0 0.0
        %675 = vmatpush1.msra.mxu0 0.0
        %676 = vmatprep.subr.mxu0 0.0
        %677 = vmatpush1.msra.mxu0 0.0
        %678 = vmatprep.subr.mxu0 0.0
        %679 = vmatpush1.msra.mxu0 0.0
        %680 = vmatprep.subr.mxu0 0.0
        %681 = vmatpush1.msra.mxu0 0.0
        %682 = vmatprep.subr.mxu0 0.0
        %683 = vmatpush1.msra.mxu0 0.0
        %684 = vmatprep.subr.mxu0 0.0
        %685 = vmatpush1.msra.mxu0 0.0
        %686 = vmatprep.subr.mxu0 0.0
        %687 = vmatpush1.msra.mxu0 0.0
        %688 = vmatprep.mubr.f32.mxu0 0.0
        %689 = vmatmul.mubr.f32.gmra.mrb[0].mxu0 %v529
        %v690 = vpop.f32.mrb[0].mxu0
        %v691 = vadd.f32 0.0, %v690
        %v692 = vpop.f32.mrb[0].mxu0
        %693 = vmatprep.mubr.f32.mxu0 0.0
        %694 = vmatmul.mubr.f32.gmra.mrb[0].mxu0 %v532
        %v695 = vpop.f32.mrb[0].mxu0
        %v696 = vadd.f32 0.0, %v695
        %v697 = vpop.f32.mrb[0].mxu0
        %698 = vmatprep.mubr.f32.mxu0 0.0
        %699 = vmatmul.mubr.f32.gmra.mrb[0].mxu0 %v535
        %v700 = vpop.f32.mrb[0].mxu0
        %v701 = vadd.f32 0.0, %v700
        %v702 = vpop.f32.mrb[0].mxu0
        %703 = vmatprep.mubr.f32.mxu0 0.0
        %704 = vmatmul.mubr.f32.gmra.mrb[0].mxu0 %v538
        %v705 = vpop.f32.mrb[0].mxu0
        %v706 = vadd.f32 0.0, %v705
        %v707 = vpop.f32.mrb[0].mxu0
        %708 = vmatprep.mubr.f32.mxu0 0.0
        %709 = vmatmul.mubr.f32.gmra.mrb[0].mxu0 %v541
        %v710 = vpop.f32.mrb[0].mxu0
        %v711 = vadd.f32 0.0, %v710
        %v712 = vpop.f32.mrb[0].mxu0
        %713 = vmatprep.mubr.f32.mxu0 0.0
        %714 = vmatmul.mubr.f32.gmra.mrb[0].mxu0 %v544
        %v715 = vpop.f32.mrb[0].mxu0
        %v716 = vadd.f32 0.0, %v715
        %v717 = vpop.f32.mrb[0].mxu0
        %718 = vmatprep.mubr.f32.mxu0 0.0
        %719 = vmatmul.mubr.f32.gmra.mrb[0].mxu0 %v547
        %v720 = vpop.f32.mrb[0].mxu0
        %v721 = vadd.f32 0.0, %v720
        %v722 = vpop.f32.mrb[0].mxu0
        %723 = vmatprep.mubr.f32.mxu0 0.0
        %724 = vmatmul.mubr.f32.gmra.mrb[0].mxu0 %v550
        %v725 = vpop.f32.mrb[0].mxu0
        %v726 = vadd.f32 0.0, %v725
        %v727 = vpop.f32.mrb[0].mxu0
        %728 = vmatprep.mubr.f32.mxu0 0.0
        %729 = vmatmul.mubr.f32.gmra.mrb[0].mxu0 %v553
        %v730 = vpop.f32.mrb[0].mxu0
        %v731 = vadd.f32 0.0, %v730
        %v732 = vpop.f32.mrb[0].mxu0
        %733 = vmatprep.mubr.f32.mxu0 0.0
        %734 = vmatmul.mubr.f32.gmra.mrb[0].mxu0 %v556
        %v735 = vpop.f32.mrb[0].mxu0
        %v736 = vadd.f32 0.0, %v735
        %v737 = vpop.f32.mrb[0].mxu0
        %738 = vmatprep.mubr.f32.mxu0 0.0
        %739 = vmatmul.mubr.f32.gmra.mrb[0].mxu0 %v559
        %v740 = vpop.f32.mrb[0].mxu0
        %v741 = vadd.f32 0.0, %v740
        %v742 = vpop.f32.mrb[0].mxu0
        %743 = vmatprep.mubr.f32.mxu0 0.0
        %744 = vmatmul.mubr.f32.gmra.mrb[0].mxu0 %v562
        %v745 = vpop.f32.mrb[0].mxu0
        %v746 = vadd.f32 0.0, %v745
        %v747 = vpop.f32.mrb[0].mxu0
        %748 = vmatprep.mubr.f32.mxu0 0.0
        %749 = vmatmul.mubr.f32.gmra.mrb[0].mxu0 %v565
        %v750 = vpop.f32.mrb[0].mxu0
        %v751 = vadd.f32 0.0, %v750
        %v752 = vpop.f32.mrb[0].mxu0
        %753 = vmatprep.mubr.f32.mxu0 0.0
        %754 = vmatmul.mubr.f32.gmra.mrb[0].mxu0 %v568
        %v755 = vpop.f32.mrb[0].mxu0
        %v756 = vadd.f32 0.0, %v755
        %v757 = vpop.f32.mrb[0].mxu0
        %758 = vmatprep.mubr.f32.mxu0 0.0
        %759 = vmatmul.mubr.f32.gmra.mrb[0].mxu0 %v571
        %v760 = vpop.f32.mrb[0].mxu0
        %v761 = vadd.f32 0.0, %v760
        %v762 = vpop.f32.mrb[0].mxu0
        %763 = vmatprep.mubr.f32.mxu0 0.0
        %764 = vmatmul.mubr.f32.gmra.mrb[0].mxu0 %v574
        %v765 = vpop.f32.mrb[0].mxu0
        %v766 = vadd.f32 0.0, %v765
        %v767 = vpop.f32.mrb[0].mxu0
        %768 = vmatprep.mubr.f32.mxu0 0.0
        %769 = vmatmul.mubr.f32.gmra.mrb[0].mxu0 %v577
        %v770 = vpop.f32.mrb[0].mxu0
        %v771 = vadd.f32 0.0, %v770
        %v772 = vpop.f32.mrb[0].mxu0
        %773 = vmatprep.mubr.f32.mxu0 0.0
        %774 = vmatmul.mubr.f32.gmra.mrb[0].mxu0 %v580
        %v775 = vpop.f32.mrb[0].mxu0
        %v776 = vadd.f32 0.0, %v775
        %v777 = vpop.f32.mrb[0].mxu0
        %778 = vmatprep.mubr.f32.mxu0 0.0
        %779 = vmatmul.mubr.f32.gmra.mrb[0].mxu0 %v583
        %v780 = vpop.f32.mrb[0].mxu0
        %v781 = vadd.f32 0.0, %v780
        %v782 = vpop.f32.mrb[0].mxu0
        %783 = vmatprep.mubr.f32.mxu0 0.0
        %784 = vmatmul.mubr.f32.gmra.mrb[0].mxu0 %v586
        %v785 = vpop.f32.mrb[0].mxu0
        %v786 = vadd.f32 0.0, %v785
        %v787 = vpop.f32.mrb[0].mxu0
        %788 = vmatprep.mubr.f32.mxu0 0.0
        %789 = vmatmul.mubr.f32.gmra.mrb[0].mxu0 %v589
        %v790 = vpop.f32.mrb[0].mxu0
        %v791 = vadd.f32 0.0, %v790
        %v792 = vpop.f32.mrb[0].mxu0
        %793 = vmatprep.mubr.f32.mxu0 0.0
        %794 = vmatmul.mubr.f32.gmra.mrb[0].mxu0 %v592
        %v795 = vpop.f32.mrb[0].mxu0
        %v796 = vadd.f32 0.0, %v795
        %v797 = vpop.f32.mrb[0].mxu0
        %798 = vmatprep.mubr.f32.mxu0 0.0
        %799 = vmatmul.mubr.f32.gmra.mrb[0].mxu0 %v595
        %v800 = vpop.f32.mrb[0].mxu0
        %v801 = vadd.f32 0.0, %v800
        %v802 = vpop.f32.mrb[0].mxu0
        %803 = vmatprep.mubr.f32.mxu0 0.0
        %804 = vmatmul.mubr.f32.gmra.mrb[0].mxu0 %v598
        %v805 = vpop.f32.mrb[0].mxu0
        %v806 = vadd.f32 0.0, %v805
        %v807 = vpop.f32.mrb[0].mxu0
        %808 = vmatprep.mubr.f32.mxu0 0.0
        %809 = vmatmul.mubr.f32.gmra.mrb[0].mxu0 %v601
        %v810 = vpop.f32.mrb[0].mxu0
        %v811 = vadd.f32 0.0, %v810
        %v812 = vpop.f32.mrb[0].mxu0
        %813 = vmatprep.mubr.f32.mxu0 0.0
        %814 = vmatmul.mubr.f32.gmra.mrb[0].mxu0 %v604
        %v815 = vpop.f32.mrb[0].mxu0
        %v816 = vadd.f32 0.0, %v815
        %v817 = vpop.f32.mrb[0].mxu0
        %818 = vmatprep.mubr.f32.mxu0 0.0
        %819 = vmatmul.mubr.f32.gmra.mrb[0].mxu0 %v607
        %v820 = vpop.f32.mrb[0].mxu0
        %v821 = vadd.f32 0.0, %v820
        %v822 = vpop.f32.mrb[0].mxu0
        %823 = vmatprep.mubr.f32.mxu0 0.0
        %824 = vmatmul.mubr.f32.gmra.mrb[0].mxu0 %v610
        %v825 = vpop.f32.mrb[0].mxu0
        %v826 = vadd.f32 0.0, %v825
        %v827 = vpop.f32.mrb[0].mxu0
        %828 = vmatprep.mubr.f32.mxu0 0.0
        %829 = vmatmul.mubr.f32.gmra.mrb[0].mxu0 %v613
        %v830 = vpop.f32.mrb[0].mxu0
        %v831 = vadd.f32 0.0, %v830
        %v832 = vpop.f32.mrb[0].mxu0
        %833 = vmatprep.mubr.f32.mxu0 0.0
        %834 = vmatmul.mubr.f32.gmra.mrb[0].mxu0 %v616
        %v835 = vpop.f32.mrb[0].mxu0
        %v836 = vadd.f32 0.0, %v835
        %v837 = vpop.f32.mrb[0].mxu0
        %838 = vmatprep.mubr.f32.mxu0 0.0
        %839 = vmatmul.mubr.f32.gmra.mrb[0].mxu0 %v619
        %v840 = vpop.f32.mrb[0].mxu0
        %v841 = vadd.f32 0.0, %v840
        %v842 = vpop.f32.mrb[0].mxu0
        %843 = vmatprep.mubr.f32.mxu0 0.0
        %844 = vmatmul.mubr.f32.gmra.mrb[0].mxu0 %v622
        %v845 = vpop.f32.mrb[0].mxu0
        %v846 = vadd.f32 0.0, %v845
        %v847 = vpop.f32.mrb[0].mxu0
        %848 = vdwg.mxu0
        %v849 = vadd.s32 %v406, 16
        %v850 = vadd.s32 %v406, 24
        %v851 = vadd.s32 %v406, 32
        %v852 = vadd.s32 %v406, 40
        %v853 = vadd.s32 %v406, 48
        %v854 = vadd.s32 %v406, 56
        %v855 = vadd.s32 %v406, 64
        %v856 = vadd.s32 %v406, 72
        %v857 = vadd.s32 %v406, 80
        %v858 = vadd.s32 %v406, 88
        %v859 = vadd.s32 %v406, 96
        %v860 = vadd.s32 %v406, 104
        %v861 = vadd.s32 %v406, 112
        %v862 = vadd.s32 %v406, 120
        %v863 = vadd.s32 %v406, 128
        %v864 = vadd.s32 %v406, 136
        %v865 = vadd.s32 %v406, 144
        %v866 = vadd.s32 %v406, 152
        %v867 = vadd.s32 %v406, 160
        %v868 = vadd.s32 %v406, 168
        %v869 = vadd.s32 %v406, 176
        %v870 = vadd.s32 %v406, 184
        %v871 = vadd.s32 %v406, 192
        %v872 = vadd.s32 %v406, 200
        %v873 = vadd.s32 %v406, 208
        %v874 = vadd.s32 %v406, 216
        %v875 = vadd.s32 %v406, 224
        %v876 = vadd.s32 %v406, 232
        %v877 = vadd.s32 %v406, 240
        %v878 = vadd.s32 %v406, 248
        %v879 = vlaneseq
        %v880 = vshrl.u32 %v879, 7
        %v881 = vsub.s32 0, %v880
        %v882 = vrot.slane %v404, %v881
        %v883 = vlaneseq
        %v884 = vshrl.u32 %v883, 7
        %v885 = vsub.s32 4, %v884
        %v886 = vrot.slane %v404, %v885
        %v887 = vlaneseq
        %v888 = vshrl.u32 %v887, 7
        %v889 = vsub.s32 0, %v888
        %v890 = vrot.slane %v882, %v889
        %v891 = vlaneseq
        %v892 = vshrl.u32 %v891, 7
        %v893 = vsub.s32 0, %v892
        %v894 = vrot.slane %v886, %v893
        %vm895 = vcmp.eq.s32.totalorder %v406, %v890
        %vm896 = vcmp.eq.s32.totalorder %v406, %v894
        %vm897 = vcmp.eq.s32.totalorder %v407, %v890
        %vm898 = vcmp.eq.s32.totalorder %v407, %v894
        %vm899 = vcmp.eq.s32.totalorder %v849, %v890
        %vm900 = vcmp.eq.s32.totalorder %v849, %v894
        %vm901 = vcmp.eq.s32.totalorder %v850, %v890
        %vm902 = vcmp.eq.s32.totalorder %v850, %v894
        %vm903 = vcmp.eq.s32.totalorder %v851, %v890
        %vm904 = vcmp.eq.s32.totalorder %v851, %v894
        %vm905 = vcmp.eq.s32.totalorder %v852, %v890
        %vm906 = vcmp.eq.s32.totalorder %v852, %v894
        %vm907 = vcmp.eq.s32.totalorder %v853, %v890
        %vm908 = vcmp.eq.s32.totalorder %v853, %v894
        %vm909 = vcmp.eq.s32.totalorder %v854, %v890
        %vm910 = vcmp.eq.s32.totalorder %v854, %v894
        %vm911 = vcmp.eq.s32.totalorder %v855, %v890
        %vm912 = vcmp.eq.s32.totalorder %v855, %v894
        %vm913 = vcmp.eq.s32.totalorder %v856, %v890
        %vm914 = vcmp.eq.s32.totalorder %v856, %v894
        %vm915 = vcmp.eq.s32.totalorder %v857, %v890
        %vm916 = vcmp.eq.s32.totalorder %v857, %v894
        %vm917 = vcmp.eq.s32.totalorder %v858, %v890
        %vm918 = vcmp.eq.s32.totalorder %v858, %v894
        %vm919 = vcmp.eq.s32.totalorder %v859, %v890
        %vm920 = vcmp.eq.s32.totalorder %v859, %v894
        %vm921 = vcmp.eq.s32.totalorder %v860, %v890
        %vm922 = vcmp.eq.s32.totalorder %v860, %v894
        %vm923 = vcmp.eq.s32.totalorder %v861, %v890
        %vm924 = vcmp.eq.s32.totalorder %v861, %v894
        %vm925 = vcmp.eq.s32.totalorder %v862, %v890
        %vm926 = vcmp.eq.s32.totalorder %v862, %v894
        %vm927 = vcmp.eq.s32.totalorder %v863, %v890
        %vm928 = vcmp.eq.s32.totalorder %v863, %v894
        %vm929 = vcmp.eq.s32.totalorder %v864, %v890
        %vm930 = vcmp.eq.s32.totalorder %v864, %v894
        %vm931 = vcmp.eq.s32.totalorder %v865, %v890
        %vm932 = vcmp.eq.s32.totalorder %v865, %v894
        %vm933 = vcmp.eq.s32.totalorder %v866, %v890
        %vm934 = vcmp.eq.s32.totalorder %v866, %v894
        %vm935 = vcmp.eq.s32.totalorder %v867, %v890
        %vm936 = vcmp.eq.s32.totalorder %v867, %v894
        %vm937 = vcmp.eq.s32.totalorder %v868, %v890
        %vm938 = vcmp.eq.s32.totalorder %v868, %v894
        %vm939 = vcmp.eq.s32.totalorder %v869, %v890
        %vm940 = vcmp.eq.s32.totalorder %v869, %v894
        %vm941 = vcmp.eq.s32.totalorder %v870, %v890
        %vm942 = vcmp.eq.s32.totalorder %v870, %v894
        %vm943 = vcmp.eq.s32.totalorder %v871, %v890
        %vm944 = vcmp.eq.s32.totalorder %v871, %v894
        %vm945 = vcmp.eq.s32.totalorder %v872, %v890
        %vm946 = vcmp.eq.s32.totalorder %v872, %v894
        %vm947 = vcmp.eq.s32.totalorder %v873, %v890
        %vm948 = vcmp.eq.s32.totalorder %v873, %v894
        %vm949 = vcmp.eq.s32.totalorder %v874, %v890
        %vm950 = vcmp.eq.s32.totalorder %v874, %v894
        %vm951 = vcmp.eq.s32.totalorder %v875, %v890
        %vm952 = vcmp.eq.s32.totalorder %v875, %v894
        %vm953 = vcmp.eq.s32.totalorder %v876, %v890
        %vm954 = vcmp.eq.s32.totalorder %v876, %v894
        %vm955 = vcmp.eq.s32.totalorder %v877, %v890
        %vm956 = vcmp.eq.s32.totalorder %v877, %v894
        %vm957 = vcmp.eq.s32.totalorder %v878, %v890
        %vm958 = vcmp.eq.s32.totalorder %v878, %v894
        %v959 = vsel %vm895, 1, 0
        %v960 = vsel %vm896, 1, 0
        %v961 = vsel %vm897, 1, 0
        %v962 = vsel %vm898, 1, 0
        %v963 = vsel %vm899, 1, 0
        %v964 = vsel %vm900, 1, 0
        %v965 = vsel %vm901, 1, 0
        %v966 = vsel %vm902, 1, 0
        %v967 = vsel %vm903, 1, 0
        %v968 = vsel %vm904, 1, 0
        %v969 = vsel %vm905, 1, 0
        %v970 = vsel %vm906, 1, 0
        %v971 = vsel %vm907, 1, 0
        %v972 = vsel %vm908, 1, 0
        %v973 = vsel %vm909, 1, 0
        %v974 = vsel %vm910, 1, 0
        %v975 = vsel %vm911, 1, 0
        %v976 = vsel %vm912, 1, 0
        %v977 = vsel %vm913, 1, 0
        %v978 = vsel %vm914, 1, 0
        %v979 = vsel %vm915, 1, 0
        %v980 = vsel %vm916, 1, 0
        %v981 = vsel %vm917, 1, 0
        %v982 = vsel %vm918, 1, 0
        %v983 = vsel %vm919, 1, 0
        %v984 = vsel %vm920, 1, 0
        %v985 = vsel %vm921, 1, 0
        %v986 = vsel %vm922, 1, 0
        %v987 = vsel %vm923, 1, 0
        %v988 = vsel %vm924, 1, 0
        %v989 = vsel %vm925, 1, 0
        %v990 = vsel %vm926, 1, 0
        %v991 = vsel %vm927, 1, 0
        %v992 = vsel %vm928, 1, 0
        %v993 = vsel %vm929, 1, 0
        %v994 = vsel %vm930, 1, 0
        %v995 = vsel %vm931, 1, 0
        %v996 = vsel %vm932, 1, 0
        %v997 = vsel %vm933, 1, 0
        %v998 = vsel %vm934, 1, 0
        %v999 = vsel %vm935, 1, 0
        %v1000 = vsel %vm936, 1, 0
        %v1001 = vsel %vm937, 1, 0
        %v1002 = vsel %vm938, 1, 0
        %v1003 = vsel %vm939, 1, 0
        %v1004 = vsel %vm940, 1, 0
        %v1005 = vsel %vm941, 1, 0
        %v1006 = vsel %vm942, 1, 0
        %v1007 = vsel %vm943, 1, 0
        %v1008 = vsel %vm944, 1, 0
        %v1009 = vsel %vm945, 1, 0
        %v1010 = vsel %vm946, 1, 0
        %v1011 = vsel %vm947, 1, 0
        %v1012 = vsel %vm948, 1, 0
        %v1013 = vsel %vm949, 1, 0
        %v1014 = vsel %vm950, 1, 0
        %v1015 = vsel %vm951, 1, 0
        %v1016 = vsel %vm952, 1, 0
        %v1017 = vsel %vm953, 1, 0
        %v1018 = vsel %vm954, 1, 0
        %v1019 = vsel %vm955, 1, 0
        %v1020 = vsel %vm956, 1, 0
        %v1021 = vsel %vm957, 1, 0
        %v1022 = vsel %vm958, 1, 0
        %v1023 = vcvt.s32.f32 %v959
        %v1024 = vcvt.s32.f32 %v960
        %v1025 = vcvt.s32.f32 %v961
        %v1026 = vcvt.s32.f32 %v962
        %v1027 = vcvt.s32.f32 %v963
        %v1028 = vcvt.s32.f32 %v964
        %v1029 = vcvt.s32.f32 %v965
        %v1030 = vcvt.s32.f32 %v966
        %v1031 = vcvt.s32.f32 %v967
        %v1032 = vcvt.s32.f32 %v968
        %v1033 = vcvt.s32.f32 %v969
        %v1034 = vcvt.s32.f32 %v970
        %v1035 = vcvt.s32.f32 %v971
        %v1036 = vcvt.s32.f32 %v972
        %v1037 = vcvt.s32.f32 %v973
        %v1038 = vcvt.s32.f32 %v974
        %v1039 = vcvt.s32.f32 %v975
        %v1040 = vcvt.s32.f32 %v976
        %v1041 = vcvt.s32.f32 %v977
        %v1042 = vcvt.s32.f32 %v978
        %v1043 = vcvt.s32.f32 %v979
        %v1044 = vcvt.s32.f32 %v980
        %v1045 = vcvt.s32.f32 %v981
        %v1046 = vcvt.s32.f32 %v982
        %v1047 = vcvt.s32.f32 %v983
        %v1048 = vcvt.s32.f32 %v984
        %v1049 = vcvt.s32.f32 %v985
        %v1050 = vcvt.s32.f32 %v986
        %v1051 = vcvt.s32.f32 %v987
        %v1052 = vcvt.s32.f32 %v988
        %v1053 = vcvt.s32.f32 %v989
        %v1054 = vcvt.s32.f32 %v990
        %v1055 = vcvt.s32.f32 %v991
        %v1056 = vcvt.s32.f32 %v992
        %v1057 = vcvt.s32.f32 %v993
        %v1058 = vcvt.s32.f32 %v994
        %v1059 = vcvt.s32.f32 %v995
        %v1060 = vcvt.s32.f32 %v996
        %v1061 = vcvt.s32.f32 %v997
        %v1062 = vcvt.s32.f32 %v998
        %v1063 = vcvt.s32.f32 %v999
        %v1064 = vcvt.s32.f32 %v1000
        %v1065 = vcvt.s32.f32 %v1001
        %v1066 = vcvt.s32.f32 %v1002
        %v1067 = vcvt.s32.f32 %v1003
        %v1068 = vcvt.s32.f32 %v1004
        %v1069 = vcvt.s32.f32 %v1005
        %v1070 = vcvt.s32.f32 %v1006
        %v1071 = vcvt.s32.f32 %v1007
        %v1072 = vcvt.s32.f32 %v1008
        %v1073 = vcvt.s32.f32 %v1009
        %v1074 = vcvt.s32.f32 %v1010
        %v1075 = vcvt.s32.f32 %v1011
        %v1076 = vcvt.s32.f32 %v1012
        %v1077 = vcvt.s32.f32 %v1013
        %v1078 = vcvt.s32.f32 %v1014
        %v1079 = vcvt.s32.f32 %v1015
        %v1080 = vcvt.s32.f32 %v1016
        %v1081 = vcvt.s32.f32 %v1017
        %v1082 = vcvt.s32.f32 %v1018
        %v1083 = vcvt.s32.f32 %v1019
        %v1084 = vcvt.s32.f32 %v1020
        %v1085 = vcvt.s32.f32 %v1021
        %v1086 = vcvt.s32.f32 %v1022
        %v1087 = vpack.c.bf16 %v1025, %v1023
        %v1088 = vpack.c.bf16 %v1026, %v1024
        %v1089 = vpack.c.bf16 %v1029, %v1027
        %v1090 = vpack.c.bf16 %v1030, %v1028
        %v1091 = vpack.c.bf16 %v1033, %v1031
        %v1092 = vpack.c.bf16 %v1034, %v1032
        %v1093 = vpack.c.bf16 %v1037, %v1035
        %v1094 = vpack.c.bf16 %v1038, %v1036
        %v1095 = vpack.c.bf16 %v1041, %v1039
        %v1096 = vpack.c.bf16 %v1042, %v1040
        %v1097 = vpack.c.bf16 %v1045, %v1043
        %v1098 = vpack.c.bf16 %v1046, %v1044
        %v1099 = vpack.c.bf16 %v1049, %v1047
        %v1100 = vpack.c.bf16 %v1050, %v1048
        %v1101 = vpack.c.bf16 %v1053, %v1051
        %v1102 = vpack.c.bf16 %v1054, %v1052
        %v1103 = vpack.c.bf16 %v1057, %v1055
        %v1104 = vpack.c.bf16 %v1058, %v1056
        %v1105 = vpack.c.bf16 %v1061, %v1059
        %v1106 = vpack.c.bf16 %v1062, %v1060
        %v1107 = vpack.c.bf16 %v1065, %v1063
        %v1108 = vpack.c.bf16 %v1066, %v1064
        %v1109 = vpack.c.bf16 %v1069, %v1067
        %v1110 = vpack.c.bf16 %v1070, %v1068
        %v1111 = vpack.c.bf16 %v1073, %v1071
        %v1112 = vpack.c.bf16 %v1074, %v1072
        %v1113 = vpack.c.bf16 %v1077, %v1075
        %v1114 = vpack.c.bf16 %v1078, %v1076
        %v1115 = vpack.c.bf16 %v1081, %v1079
        %v1116 = vpack.c.bf16 %v1082, %v1080
        %v1117 = vpack.c.bf16 %v1085, %v1083
        %v1118 = vpack.c.bf16 %v1086, %v1084
        %v1119 = vld [vmem:[#allocation5] sm:$0xf]
        %v1120 = vld [vmem:[#allocation5 + $0x4] sm:$0xf]
        %v1121 = vld [vmem:[#allocation5 + $0x8] sm:$0xf]
        %v1122 = vld [vmem:[#allocation5 + $0xc] sm:$0xf]
        %v1123 = vld [vmem:[#allocation5 + $0x10] sm:$0xf]
        %v1124 = vld [vmem:[#allocation5 + $0x14] sm:$0xf]
        %v1125 = vld [vmem:[#allocation5 + $0x18] sm:$0xf]
        %v1126 = vld [vmem:[#allocation5 + $0x1c] sm:$0xf]
        %v1127 = vld [vmem:[#allocation5 + $0x20] sm:$0xf]
        %v1128 = vld [vmem:[#allocation5 + $0x24] sm:$0xf]
        %v1129 = vld [vmem:[#allocation5 + $0x28] sm:$0xf]
        %v1130 = vld [vmem:[#allocation5 + $0x2c] sm:$0xf]
        %v1131 = vld [vmem:[#allocation5 + $0x30] sm:$0xf]
        %v1132 = vld [vmem:[#allocation5 + $0x34] sm:$0xf]
        %v1133 = vld [vmem:[#allocation5 + $0x38] sm:$0xf]
        %v1134 = vld [vmem:[#allocation5 + $0x3c] sm:$0xf]
        %v1135 = vld [vmem:[#allocation5 + $0x40] sm:$0xf]
        %v1136 = vld [vmem:[#allocation5 + $0x44] sm:$0xf]
        %v1137 = vld [vmem:[#allocation5 + $0x48] sm:$0xf]
        %v1138 = vld [vmem:[#allocation5 + $0x4c] sm:$0xf]
        %v1139 = vld [vmem:[#allocation5 + $0x50] sm:$0xf]
        %v1140 = vld [vmem:[#allocation5 + $0x54] sm:$0xf]
        %v1141 = vld [vmem:[#allocation5 + $0x58] sm:$0xf]
        %v1142 = vld [vmem:[#allocation5 + $0x5c] sm:$0xf]
        %v1143 = vld [vmem:[#allocation5 + $0x60] sm:$0xf]
        %v1144 = vld [vmem:[#allocation5 + $0x64] sm:$0xf]
        %v1145 = vld [vmem:[#allocation5 + $0x68] sm:$0xf]
        %v1146 = vld [vmem:[#allocation5 + $0x6c] sm:$0xf]
        %v1147 = vld [vmem:[#allocation5 + $0x70] sm:$0xf]
        %v1148 = vld [vmem:[#allocation5 + $0x74] sm:$0xf]
        %v1149 = vld [vmem:[#allocation5 + $0x78] sm:$0xf]
        %v1150 = vld [vmem:[#allocation5 + $0x7c] sm:$0xf]
        %1151 = vxpose.xlu0.c.b16.start [1/8] %v1087, 128
        %1152 = vxpose.xlu0.c.b16.cont [2/8] %v1089, 128
        %1153 = vxpose.xlu0.c.b16.cont [3/8] %v1091, 128
        %1154 = vxpose.xlu0.c.b16.cont [4/8] %v1093, 128
        %1155 = vxpose.xlu0.c.b16.cont [5/8] %v1095, 128
        %1156 = vxpose.xlu0.c.b16.cont [6/8] %v1097, 128
        %1157 = vxpose.xlu0.c.b16.cont [7/8] %v1099, 128
        %1158 = vxpose.xlu0.c.b16.end [8/8] %v1101, 128
        %v1159 = vpop.trf.xlu0
        %v1160 = vpop.trf.xlu0
        %v1161 = vpop.trf.xlu0
        %v1162 = vpop.trf.xlu0
        %v1163 = vpop.trf.xlu0
        %v1164 = vpop.trf.xlu0
        %v1165 = vpop.trf.xlu0
        %v1166 = vpop.trf.xlu0
        %1167 = vxpose.xlu0.c.b16.start [1/8] %v1088, 128
        %1168 = vxpose.xlu0.c.b16.cont [2/8] %v1090, 128
        %1169 = vxpose.xlu0.c.b16.cont [3/8] %v1092, 128
        %1170 = vxpose.xlu0.c.b16.cont [4/8] %v1094, 128
        %1171 = vxpose.xlu0.c.b16.cont [5/8] %v1096, 128
        %1172 = vxpose.xlu0.c.b16.cont [6/8] %v1098, 128
        %1173 = vxpose.xlu0.c.b16.cont [7/8] %v1100, 128
        %1174 = vxpose.xlu0.c.b16.end [8/8] %v1102, 128
        %v1175 = vpop.trf.xlu0
        %v1176 = vpop.trf.xlu0
        %v1177 = vpop.trf.xlu0
        %v1178 = vpop.trf.xlu0
        %v1179 = vpop.trf.xlu0
        %v1180 = vpop.trf.xlu0
        %v1181 = vpop.trf.xlu0
        %v1182 = vpop.trf.xlu0
        %1183 = vxpose.xlu0.c.b16.start [1/8] %v1103, 128
        %1184 = vxpose.xlu0.c.b16.cont [2/8] %v1105, 128
        %1185 = vxpose.xlu0.c.b16.cont [3/8] %v1107, 128
        %1186 = vxpose.xlu0.c.b16.cont [4/8] %v1109, 128
        %1187 = vxpose.xlu0.c.b16.cont [5/8] %v1111, 128
        %1188 = vxpose.xlu0.c.b16.cont [6/8] %v1113, 128
        %1189 = vxpose.xlu0.c.b16.cont [7/8] %v1115, 128
        %1190 = vxpose.xlu0.c.b16.end [8/8] %v1117, 128
        %v1191 = vpop.trf.xlu0
        %v1192 = vpop.trf.xlu0
        %v1193 = vpop.trf.xlu0
        %v1194 = vpop.trf.xlu0
        %v1195 = vpop.trf.xlu0
        %v1196 = vpop.trf.xlu0
        %v1197 = vpop.trf.xlu0
        %v1198 = vpop.trf.xlu0
        %1199 = vxpose.xlu0.c.b16.start [1/8] %v1104, 128
        %1200 = vxpose.xlu0.c.b16.cont [2/8] %v1106, 128
        %1201 = vxpose.xlu0.c.b16.cont [3/8] %v1108, 128
        %1202 = vxpose.xlu0.c.b16.cont [4/8] %v1110, 128
        %1203 = vxpose.xlu0.c.b16.cont [5/8] %v1112, 128
        %1204 = vxpose.xlu0.c.b16.cont [6/8] %v1114, 128
        %1205 = vxpose.xlu0.c.b16.cont [7/8] %v1116, 128
        %1206 = vxpose.xlu0.c.b16.end [8/8] %v1118, 128
        %v1207 = vpop.trf.xlu0
        %v1208 = vpop.trf.xlu0
        %v1209 = vpop.trf.xlu0
        %v1210 = vpop.trf.xlu0
        %v1211 = vpop.trf.xlu0
        %v1212 = vpop.trf.xlu0
        %v1213 = vpop.trf.xlu0
        %v1214 = vpop.trf.xlu0
        %v1247 = vunpack.c.l.b16 %v1119
        %v1248 = vunpack.c.l.b16 %v1120
        %v1249 = vunpack.c.l.b16 %v1121
        %v1250 = vunpack.c.l.b16 %v1122
        %v1251 = vunpack.c.l.b16 %v1123
        %v1252 = vunpack.c.l.b16 %v1124
        %v1253 = vunpack.c.l.b16 %v1125
        %v1254 = vunpack.c.l.b16 %v1126
        %v1255 = vunpack.c.l.b16 %v1127
        %v1256 = vunpack.c.l.b16 %v1128
        %v1257 = vunpack.c.l.b16 %v1129
        %v1258 = vunpack.c.l.b16 %v1130
        %v1259 = vunpack.c.l.b16 %v1131
        %v1260 = vunpack.c.l.b16 %v1132
        %v1261 = vunpack.c.l.b16 %v1133
        %v1262 = vunpack.c.l.b16 %v1134
        %v1263 = vunpack.c.l.b16 %v1135
        %v1264 = vunpack.c.l.b16 %v1136
        %v1265 = vunpack.c.l.b16 %v1137
        %v1266 = vunpack.c.l.b16 %v1138
        %v1267 = vunpack.c.l.b16 %v1139
        %v1268 = vunpack.c.l.b16 %v1140
        %v1269 = vunpack.c.l.b16 %v1141
        %v1270 = vunpack.c.l.b16 %v1142
        %v1271 = vunpack.c.l.b16 %v1143
        %v1272 = vunpack.c.l.b16 %v1144
        %v1273 = vunpack.c.l.b16 %v1145
        %v1274 = vunpack.c.l.b16 %v1146
        %v1275 = vunpack.c.l.b16 %v1147
        %v1276 = vunpack.c.l.b16 %v1148
        %v1277 = vunpack.c.l.b16 %v1149
        %v1278 = vunpack.c.l.b16 %v1150
        %v1279 = vpack.c.b16 %v1248, %v1247
        %v1280 = vpack.c.b16 %v1250, %v1249
        %v1281 = vpack.c.b16 %v1252, %v1251
        %v1282 = vpack.c.b16 %v1254, %v1253
        %v1283 = vpack.c.b16 %v1256, %v1255
        %v1284 = vpack.c.b16 %v1258, %v1257
        %v1285 = vpack.c.b16 %v1260, %v1259
        %v1286 = vpack.c.b16 %v1262, %v1261
        %v1287 = vpack.c.b16 %v1264, %v1263
        %v1288 = vpack.c.b16 %v1266, %v1265
        %v1289 = vpack.c.b16 %v1268, %v1267
        %v1290 = vpack.c.b16 %v1270, %v1269
        %v1291 = vpack.c.b16 %v1272, %v1271
        %v1292 = vpack.c.b16 %v1274, %v1273
        %v1293 = vpack.c.b16 %v1276, %v1275
        %v1294 = vpack.c.b16 %v1278, %v1277
        %1311 = vmatprep.subr.bf16.mxu0 0
        %1312 = vmatpush1.bf16.msra.mxu0 %v1279
        %1313 = vmatprep.subr.bf16.mxu0 0
        %1314 = vmatpush1.bf16.msra.mxu0 %v1280
        %1315 = vmatprep.subr.bf16.mxu0 0
        %1316 = vmatpush1.bf16.msra.mxu0 %v1281
        %1317 = vmatprep.subr.bf16.mxu0 0
        %1318 = vmatpush1.bf16.msra.mxu0 %v1282
        %1319 = vmatprep.subr.bf16.mxu0 0
        %1320 = vmatpush1.bf16.msra.mxu0 %v1283
        %1321 = vmatprep.subr.bf16.mxu0 0
        %1322 = vmatpush1.bf16.msra.mxu0 %v1284
        %1323 = vmatprep.subr.bf16.mxu0 0
        %1324 = vmatpush1.bf16.msra.mxu0 %v1285
        %1325 = vmatprep.subr.bf16.mxu0 0
        %1326 = vmatpush1.bf16.msra.mxu0 %v1286
        %1327 = vmatprep.subr.bf16.mxu0 0
        %1328 = vmatpush1.bf16.msra.mxu0 %v1287
        %1329 = vmatprep.subr.bf16.mxu0 0
        %1330 = vmatpush1.bf16.msra.mxu0 %v1288
        %1331 = vmatprep.subr.bf16.mxu0 0
        %1332 = vmatpush1.bf16.msra.mxu0 %v1289
        %1333 = vmatprep.subr.bf16.mxu0 0
        %1334 = vmatpush1.bf16.msra.mxu0 %v1290
        %1335 = vmatprep.subr.bf16.mxu0 0
        %1336 = vmatpush1.bf16.msra.mxu0 %v1291
        %1337 = vmatprep.subr.bf16.mxu0 0
        %1338 = vmatpush1.bf16.msra.mxu0 %v1292
        %1339 = vmatprep.subr.bf16.mxu0 0
        %1340 = vmatpush1.bf16.msra.mxu0 %v1293
        %1341 = vmatprep.subr.bf16.mxu0 0
        %1342 = vmatpush1.bf16.msra.mxu0 %v1294
        %1343 = vmatprep.mubr.bf16.mxu0 %v1191
        %1344 = vmatmul.mubr.bf16.gmra.mrb[0].mxu0 %v1159
        %v1345 = vpop.f32.mrb[0].mxu0
        %v1346 = vadd.f32 %v691, %v1345
        %v1347 = vpop.f32.mrb[0].mxu0
        %v1348 = vpop.f32.mrb[0].mxu0
        %v1349 = vadd.f32 %v696, %v1348
        %v1350 = vpop.f32.mrb[0].mxu0
        %1351 = vmatprep.mubr.bf16.mxu0 %v1192
        %1352 = vmatmul.mubr.bf16.gmra.mrb[0].mxu0 %v1160
        %v1353 = vpop.f32.mrb[0].mxu0
        %v1354 = vadd.f32 %v701, %v1353
        %v1355 = vpop.f32.mrb[0].mxu0
        %v1356 = vpop.f32.mrb[0].mxu0
        %v1357 = vadd.f32 %v706, %v1356
        %v1358 = vpop.f32.mrb[0].mxu0
        %1359 = vmatprep.mubr.bf16.mxu0 %v1193
        %1360 = vmatmul.mubr.bf16.gmra.mrb[0].mxu0 %v1161
        %v1361 = vpop.f32.mrb[0].mxu0
        %v1362 = vadd.f32 %v711, %v1361
        %v1363 = vpop.f32.mrb[0].mxu0
        %v1364 = vpop.f32.mrb[0].mxu0
        %v1365 = vadd.f32 %v716, %v1364
        %v1366 = vpop.f32.mrb[0].mxu0
        %1367 = vmatprep.mubr.bf16.mxu0 %v1194
        %1368 = vmatmul.mubr.bf16.gmra.mrb[0].mxu0 %v1162
        %v1369 = vpop.f32.mrb[0].mxu0
        %v1370 = vadd.f32 %v721, %v1369
        %v1371 = vpop.f32.mrb[0].mxu0
        %v1372 = vpop.f32.mrb[0].mxu0
        %v1373 = vadd.f32 %v726, %v1372
        %v1374 = vpop.f32.mrb[0].mxu0
        %1375 = vmatprep.mubr.bf16.mxu0 %v1195
        %1376 = vmatmul.mubr.bf16.gmra.mrb[0].mxu0 %v1163
        %v1377 = vpop.f32.mrb[0].mxu0
        %v1378 = vadd.f32 %v731, %v1377
        %v1379 = vpop.f32.mrb[0].mxu0
        %v1380 = vpop.f32.mrb[0].mxu0
        %v1381 = vadd.f32 %v736, %v1380
        %v1382 = vpop.f32.mrb[0].mxu0
        %1383 = vmatprep.mubr.bf16.mxu0 %v1196
        %1384 = vmatmul.mubr.bf16.gmra.mrb[0].mxu0 %v1164
        %v1385 = vpop.f32.mrb[0].mxu0
        %v1386 = vadd.f32 %v741, %v1385
        %v1387 = vpop.f32.mrb[0].mxu0
        %v1388 = vpop.f32.mrb[0].mxu0
        %v1389 = vadd.f32 %v746, %v1388
        %v1390 = vpop.f32.mrb[0].mxu0
        %1391 = vmatprep.mubr.bf16.mxu0 %v1197
        %1392 = vmatmul.mubr.bf16.gmra.mrb[0].mxu0 %v1165
        %v1393 = vpop.f32.mrb[0].mxu0
        %v1394 = vadd.f32 %v751, %v1393
        %v1395 = vpop.f32.mrb[0].mxu0
        %v1396 = vpop.f32.mrb[0].mxu0
        %v1397 = vadd.f32 %v756, %v1396
        %v1398 = vpop.f32.mrb[0].mxu0
        %1399 = vmatprep.mubr.bf16.mxu0 %v1198
        %1400 = vmatmul.mubr.bf16.gmra.mrb[0].mxu0 %v1166
        %v1401 = vpop.f32.mrb[0].mxu0
        %v1402 = vadd.f32 %v761, %v1401
        %v1403 = vpop.f32.mrb[0].mxu0
        %v1404 = vpop.f32.mrb[0].mxu0
        %v1405 = vadd.f32 %v766, %v1404
        %v1406 = vpop.f32.mrb[0].mxu0
        %1407 = vmatprep.mubr.bf16.mxu0 %v1207
        %1408 = vmatmul.mubr.bf16.gmra.mrb[0].mxu0 %v1175
        %v1409 = vpop.f32.mrb[0].mxu0
        %v1410 = vadd.f32 %v771, %v1409
        %v1411 = vpop.f32.mrb[0].mxu0
        %v1412 = vpop.f32.mrb[0].mxu0
        %v1413 = vadd.f32 %v776, %v1412
        %v1414 = vpop.f32.mrb[0].mxu0
        %1415 = vmatprep.mubr.bf16.mxu0 %v1208
        %1416 = vmatmul.mubr.bf16.gmra.mrb[0].mxu0 %v1176
        %v1417 = vpop.f32.mrb[0].mxu0
        %v1418 = vadd.f32 %v781, %v1417
        %v1419 = vpop.f32.mrb[0].mxu0
        %v1420 = vpop.f32.mrb[0].mxu0
        %v1421 = vadd.f32 %v786, %v1420
        %v1422 = vpop.f32.mrb[0].mxu0
        %1423 = vmatprep.mubr.bf16.mxu0 %v1209
        %1424 = vmatmul.mubr.bf16.gmra.mrb[0].mxu0 %v1177
        %v1425 = vpop.f32.mrb[0].mxu0
        %v1426 = vadd.f32 %v791, %v1425
        %v1427 = vpop.f32.mrb[0].mxu0
        %v1428 = vpop.f32.mrb[0].mxu0
        %v1429 = vadd.f32 %v796, %v1428
        %v1430 = vpop.f32.mrb[0].mxu0
        %1431 = vmatprep.mubr.bf16.mxu0 %v1210
        %1432 = vmatmul.mubr.bf16.gmra.mrb[0].mxu0 %v1178
        %v1433 = vpop.f32.mrb[0].mxu0
        %v1434 = vadd.f32 %v801, %v1433
        %v1435 = vpop.f32.mrb[0].mxu0
        %v1436 = vpop.f32.mrb[0].mxu0
        %v1437 = vadd.f32 %v806, %v1436
        %v1438 = vpop.f32.mrb[0].mxu0
        %1439 = vmatprep.mubr.bf16.mxu0 %v1211
        %1440 = vmatmul.mubr.bf16.gmra.mrb[0].mxu0 %v1179
        %v1441 = vpop.f32.mrb[0].mxu0
        %v1442 = vadd.f32 %v811, %v1441
        %v1443 = vpop.f32.mrb[0].mxu0
        %v1444 = vpop.f32.mrb[0].mxu0
        %v1445 = vadd.f32 %v816, %v1444
        %v1446 = vpop.f32.mrb[0].mxu0
        %1447 = vmatprep.mubr.bf16.mxu0 %v1212
        %1448 = vmatmul.mubr.bf16.gmra.mrb[0].mxu0 %v1180
        %v1449 = vpop.f32.mrb[0].mxu0
        %v1450 = vadd.f32 %v821, %v1449
        %v1451 = vpop.f32.mrb[0].mxu0
        %v1452 = vpop.f32.mrb[0].mxu0
        %v1453 = vadd.f32 %v826, %v1452
        %v1454 = vpop.f32.mrb[0].mxu0
        %1455 = vmatprep.mubr.bf16.mxu0 %v1213
        %1456 = vmatmul.mubr.bf16.gmra.mrb[0].mxu0 %v1181
        %v1457 = vpop.f32.mrb[0].mxu0
        %v1458 = vadd.f32 %v831, %v1457
        %v1459 = vpop.f32.mrb[0].mxu0
        %v1460 = vpop.f32.mrb[0].mxu0
        %v1461 = vadd.f32 %v836, %v1460
        %v1462 = vpop.f32.mrb[0].mxu0
        %1463 = vmatprep.mubr.bf16.mxu0 %v1214
        %1464 = vmatmul.mubr.bf16.gmra.mrb[0].mxu0 %v1182
        %v1465 = vpop.f32.mrb[0].mxu0
        %v1466 = vadd.f32 %v841, %v1465
        %v1467 = vpop.f32.mrb[0].mxu0
        %v1468 = vpop.f32.mrb[0].mxu0
        %v1469 = vadd.f32 %v846, %v1468
        %v1470 = vpop.f32.mrb[0].mxu0
        %1471 = vdwg.mxu0
        %v1472 = vpack.c.bf16 %v1349, %v1346
        %v1473 = vpack.c.bf16 %v1357, %v1354
        %v1474 = vpack.c.bf16 %v1365, %v1362
        %v1475 = vpack.c.bf16 %v1373, %v1370
        %v1476 = vpack.c.bf16 %v1381, %v1378
        %v1477 = vpack.c.bf16 %v1389, %v1386
        %v1478 = vpack.c.bf16 %v1397, %v1394
        %v1479 = vpack.c.bf16 %v1405, %v1402
        %v1480 = vpack.c.bf16 %v1413, %v1410
        %v1481 = vpack.c.bf16 %v1421, %v1418
        %v1482 = vpack.c.bf16 %v1429, %v1426
        %v1483 = vpack.c.bf16 %v1437, %v1434
        %v1484 = vpack.c.bf16 %v1445, %v1442
        %v1485 = vpack.c.bf16 %v1453, %v1450
        %v1486 = vpack.c.bf16 %v1461, %v1458
        %v1487 = vpack.c.bf16 %v1469, %v1466
        %v1488 = vlaneseq
        %v1489 = vshrl.u32 %v1488, 7
        %v1490 = vsub.s32 1, %v1489
        %v1491 = vrot.slane %v404, %v1490
        %v1492 = vlaneseq
        %v1493 = vshrl.u32 %v1492, 7
        %v1494 = vsub.s32 5, %v1493
        %v1495 = vrot.slane %v404, %v1494
        %v1496 = vlaneseq
        %v1497 = vshrl.u32 %v1496, 7
        %v1498 = vsub.s32 1, %v1497
        %v1499 = vrot.slane %v1491, %v1498
        %v1500 = vlaneseq
        %v1501 = vshrl.u32 %v1500, 7
        %v1502 = vsub.s32 1, %v1501
        %v1503 = vrot.slane %v1495, %v1502
        %vm1504 = vcmp.eq.s32.totalorder %v406, %v1499
        %vm1505 = vcmp.eq.s32.totalorder %v406, %v1503
        %vm1506 = vcmp.eq.s32.totalorder %v407, %v1499
        %vm1507 = vcmp.eq.s32.totalorder %v407, %v1503
        %vm1508 = vcmp.eq.s32.totalorder %v849, %v1499
        %vm1509 = vcmp.eq.s32.totalorder %v849, %v1503
        %vm1510 = vcmp.eq.s32.totalorder %v850, %v1499
        %vm1511 = vcmp.eq.s32.totalorder %v850, %v1503
        %vm1512 = vcmp.eq.s32.totalorder %v851, %v1499
        %vm1513 = vcmp.eq.s32.totalorder %v851, %v1503
        %vm1514 = vcmp.eq.s32.totalorder %v852, %v1499
        %vm1515 = vcmp.eq.s32.totalorder %v852, %v1503
        %vm1516 = vcmp.eq.s32.totalorder %v853, %v1499
        %vm1517 = vcmp.eq.s32.totalorder %v853, %v1503
        %vm1518 = vcmp.eq.s32.totalorder %v854, %v1499
        %vm1519 = vcmp.eq.s32.totalorder %v854, %v1503
        %vm1520 = vcmp.eq.s32.totalorder %v855, %v1499
        %vm1521 = vcmp.eq.s32.totalorder %v855, %v1503
        %vm1522 = vcmp.eq.s32.totalorder %v856, %v1499
        %vm1523 = vcmp.eq.s32.totalorder %v856, %v1503
        %vm1524 = vcmp.eq.s32.totalorder %v857, %v1499
        %vm1525 = vcmp.eq.s32.totalorder %v857, %v1503
        %vm1526 = vcmp.eq.s32.totalorder %v858, %v1499
        %vm1527 = vcmp.eq.s32.totalorder %v858, %v1503
        %vm1528 = vcmp.eq.s32.totalorder %v859, %v1499
        %vm1529 = vcmp.eq.s32.totalorder %v859, %v1503
        %vm1530 = vcmp.eq.s32.totalorder %v860, %v1499
        %vm1531 = vcmp.eq.s32.totalorder %v860, %v1503
        %vm1532 = vcmp.eq.s32.totalorder %v861, %v1499
        %vm1533 = vcmp.eq.s32.totalorder %v861, %v1503
        %vm1534 = vcmp.eq.s32.totalorder %v862, %v1499
        %vm1535 = vcmp.eq.s32.totalorder %v862, %v1503
        %vm1536 = vcmp.eq.s32.totalorder %v863, %v1499
        %vm1537 = vcmp.eq.s32.totalorder %v863, %v1503
        %vm1538 = vcmp.eq.s32.totalorder %v864, %v1499
        %vm1539 = vcmp.eq.s32.totalorder %v864, %v1503
        %vm1540 = vcmp.eq.s32.totalorder %v865, %v1499
        %vm1541 = vcmp.eq.s32.totalorder %v865, %v1503
        %vm1542 = vcmp.eq.s32.totalorder %v866, %v1499
        %vm1543 = vcmp.eq.s32.totalorder %v866, %v1503
        %vm1544 = vcmp.eq.s32.totalorder %v867, %v1499
        %vm1545 = vcmp.eq.s32.totalorder %v867, %v1503
        %vm1546 = vcmp.eq.s32.totalorder %v868, %v1499
        %vm1547 = vcmp.eq.s32.totalorder %v868, %v1503
        %vm1548 = vcmp.eq.s32.totalorder %v869, %v1499
        %vm1549 = vcmp.eq.s32.totalorder %v869, %v1503
        %vm1550 = vcmp.eq.s32.totalorder %v870, %v1499
        %vm1551 = vcmp.eq.s32.totalorder %v870, %v1503
        %vm1552 = vcmp.eq.s32.totalorder %v871, %v1499
        %vm1553 = vcmp.eq.s32.totalorder %v871, %v1503
        %vm1554 = vcmp.eq.s32.totalorder %v872, %v1499
        %vm1555 = vcmp.eq.s32.totalorder %v872, %v1503
        %vm1556 = vcmp.eq.s32.totalorder %v873, %v1499
        %vm1557 = vcmp.eq.s32.totalorder %v873, %v1503
        %vm1558 = vcmp.eq.s32.totalorder %v874, %v1499
        %vm1559 = vcmp.eq.s32.totalorder %v874, %v1503
        %vm1560 = vcmp.eq.s32.totalorder %v875, %v1499
        %vm1561 = vcmp.eq.s32.totalorder %v875, %v1503
        %vm1562 = vcmp.eq.s32.totalorder %v876, %v1499
        %vm1563 = vcmp.eq.s32.totalorder %v876, %v1503
        %vm1564 = vcmp.eq.s32.totalorder %v877, %v1499
        %vm1565 = vcmp.eq.s32.totalorder %v877, %v1503
        %vm1566 = vcmp.eq.s32.totalorder %v878, %v1499
        %vm1567 = vcmp.eq.s32.totalorder %v878, %v1503
        %v1568 = vsel %vm1504, 1, 0
        %v1569 = vsel %vm1505, 1, 0
        %v1570 = vsel %vm1506, 1, 0
        %v1571 = vsel %vm1507, 1, 0
        %v1572 = vsel %vm1508, 1, 0
        %v1573 = vsel %vm1509, 1, 0
        %v1574 = vsel %vm1510, 1, 0
        %v1575 = vsel %vm1511, 1, 0
        %v1576 = vsel %vm1512, 1, 0
        %v1577 = vsel %vm1513, 1, 0
        %v1578 = vsel %vm1514, 1, 0
        %v1579 = vsel %vm1515, 1, 0
        %v1580 = vsel %vm1516, 1, 0
        %v1581 = vsel %vm1517, 1, 0
        %v1582 = vsel %vm1518, 1, 0
        %v1583 = vsel %vm1519, 1, 0
        %v1584 = vsel %vm1520, 1, 0
        %v1585 = vsel %vm1521, 1, 0
        %v1586 = vsel %vm1522, 1, 0
        %v1587 = vsel %vm1523, 1, 0
        %v1588 = vsel %vm1524, 1, 0
        %v1589 = vsel %vm1525, 1, 0
        %v1590 = vsel %vm1526, 1, 0
        %v1591 = vsel %vm1527, 1, 0
        %v1592 = vsel %vm1528, 1, 0
        %v1593 = vsel %vm1529, 1, 0
        %v1594 = vsel %vm1530, 1, 0
        %v1595 = vsel %vm1531, 1, 0
        %v1596 = vsel %vm1532, 1, 0
        %v1597 = vsel %vm1533, 1, 0
        %v1598 = vsel %vm1534, 1, 0
        %v1599 = vsel %vm1535, 1, 0
        %v1600 = vsel %vm1536, 1, 0
        %v1601 = vsel %vm1537, 1, 0
        %v1602 = vsel %vm1538, 1, 0
        %v1603 = vsel %vm1539, 1, 0
        %v1604 = vsel %vm1540, 1, 0
        %v1605 = vsel %vm1541, 1, 0
        %v1606 = vsel %vm1542, 1, 0
        %v1607 = vsel %vm1543, 1, 0
        %v1608 = vsel %vm1544, 1, 0
        %v1609 = vsel %vm1545, 1, 0
        %v1610 = vsel %vm1546, 1, 0
        %v1611 = vsel %vm1547, 1, 0
        %v1612 = vsel %vm1548, 1, 0
        %v1613 = vsel %vm1549, 1, 0
        %v1614 = vsel %vm1550, 1, 0
        %v1615 = vsel %vm1551, 1, 0
        %v1616 = vsel %vm1552, 1, 0
        %v1617 = vsel %vm1553, 1, 0
        %v1618 = vsel %vm1554, 1, 0
        %v1619 = vsel %vm1555, 1, 0
        %v1620 = vsel %vm1556, 1, 0
        %v1621 = vsel %vm1557, 1, 0
        %v1622 = vsel %vm1558, 1, 0
        %v1623 = vsel %vm1559, 1, 0
        %v1624 = vsel %vm1560, 1, 0
        %v1625 = vsel %vm1561, 1, 0
        %v1626 = vsel %vm1562, 1, 0
        %v1627 = vsel %vm1563, 1, 0
        %v1628 = vsel %vm1564, 1, 0
        %v1629 = vsel %vm1565, 1, 0
        %v1630 = vsel %vm1566, 1, 0
        %v1631 = vsel %vm1567, 1, 0
        %v1632 = vcvt.s32.f32 %v1568
        %v1633 = vcvt.s32.f32 %v1569
        %v1634 = vcvt.s32.f32 %v1570
        %v1635 = vcvt.s32.f32 %v1571
        %v1636 = vcvt.s32.f32 %v1572
        %v1637 = vcvt.s32.f32 %v1573
        %v1638 = vcvt.s32.f32 %v1574
        %v1639 = vcvt.s32.f32 %v1575
        %v1640 = vcvt.s32.f32 %v1576
        %v1641 = vcvt.s32.f32 %v1577
        %v1642 = vcvt.s32.f32 %v1578
        %v1643 = vcvt.s32.f32 %v1579
        %v1644 = vcvt.s32.f32 %v1580
        %v1645 = vcvt.s32.f32 %v1581
        %v1646 = vcvt.s32.f32 %v1582
        %v1647 = vcvt.s32.f32 %v1583
        %v1648 = vcvt.s32.f32 %v1584
        %v1649 = vcvt.s32.f32 %v1585
        %v1650 = vcvt.s32.f32 %v1586
        %v1651 = vcvt.s32.f32 %v1587
        %v1652 = vcvt.s32.f32 %v1588
        %v1653 = vcvt.s32.f32 %v1589
        %v1654 = vcvt.s32.f32 %v1590
        %v1655 = vcvt.s32.f32 %v1591
        %v1656 = vcvt.s32.f32 %v1592
        %v1657 = vcvt.s32.f32 %v1593
        %v1658 = vcvt.s32.f32 %v1594
        %v1659 = vcvt.s32.f32 %v1595
        %v1660 = vcvt.s32.f32 %v1596
        %v1661 = vcvt.s32.f32 %v1597
        %v1662 = vcvt.s32.f32 %v1598
        %v1663 = vcvt.s32.f32 %v1599
        %v1664 = vcvt.s32.f32 %v1600
        %v1665 = vcvt.s32.f32 %v1601
        %v1666 = vcvt.s32.f32 %v1602
        %v1667 = vcvt.s32.f32 %v1603
        %v1668 = vcvt.s32.f32 %v1604
        %v1669 = vcvt.s32.f32 %v1605
        %v1670 = vcvt.s32.f32 %v1606
        %v1671 = vcvt.s32.f32 %v1607
        %v1672 = vcvt.s32.f32 %v1608
        %v1673 = vcvt.s32.f32 %v1609
        %v1674 = vcvt.s32.f32 %v1610
        %v1675 = vcvt.s32.f32 %v1611
        %v1676 = vcvt.s32.f32 %v1612
        %v1677 = vcvt.s32.f32 %v1613
        %v1678 = vcvt.s32.f32 %v1614
        %v1679 = vcvt.s32.f32 %v1615
        %v1680 = vcvt.s32.f32 %v1616
        %v1681 = vcvt.s32.f32 %v1617
        %v1682 = vcvt.s32.f32 %v1618
        %v1683 = vcvt.s32.f32 %v1619
        %v1684 = vcvt.s32.f32 %v1620
        %v1685 = vcvt.s32.f32 %v1621
        %v1686 = vcvt.s32.f32 %v1622
        %v1687 = vcvt.s32.f32 %v1623
        %v1688 = vcvt.s32.f32 %v1624
        %v1689 = vcvt.s32.f32 %v1625
        %v1690 = vcvt.s32.f32 %v1626
        %v1691 = vcvt.s32.f32 %v1627
        %v1692 = vcvt.s32.f32 %v1628
        %v1693 = vcvt.s32.f32 %v1629
        %v1694 = vcvt.s32.f32 %v1630
        %v1695 = vcvt.s32.f32 %v1631
        %v1696 = vpack.c.bf16 %v1634, %v1632
        %v1697 = vpack.c.bf16 %v1635, %v1633
        %v1698 = vpack.c.bf16 %v1638, %v1636
        %v1699 = vpack.c.bf16 %v1639, %v1637
        %v1700 = vpack.c.bf16 %v1642, %v1640
        %v1701 = vpack.c.bf16 %v1643, %v1641
        %v1702 = vpack.c.bf16 %v1646, %v1644
        %v1703 = vpack.c.bf16 %v1647, %v1645
        %v1704 = vpack.c.bf16 %v1650, %v1648
        %v1705 = vpack.c.bf16 %v1651, %v1649
        %v1706 = vpack.c.bf16 %v1654, %v1652
        %v1707 = vpack.c.bf16 %v1655, %v1653
        %v1708 = vpack.c.bf16 %v1658, %v1656
        %v1709 = vpack.c.bf16 %v1659, %v1657
        %v1710 = vpack.c.bf16 %v1662, %v1660
        %v1711 = vpack.c.bf16 %v1663, %v1661
        %v1712 = vpack.c.bf16 %v1666, %v1664
        %v1713 = vpack.c.bf16 %v1667, %v1665
        %v1714 = vpack.c.bf16 %v1670, %v1668
        %v1715 = vpack.c.bf16 %v1671, %v1669
        %v1716 = vpack.c.bf16 %v1674, %v1672
        %v1717 = vpack.c.bf16 %v1675, %v1673
        %v1718 = vpack.c.bf16 %v1678, %v1676
        %v1719 = vpack.c.bf16 %v1679, %v1677
        %v1720 = vpack.c.bf16 %v1682, %v1680
        %v1721 = vpack.c.bf16 %v1683, %v1681
        %v1722 = vpack.c.bf16 %v1686, %v1684
        %v1723 = vpack.c.bf16 %v1687, %v1685
        %v1724 = vpack.c.bf16 %v1690, %v1688
        %v1725 = vpack.c.bf16 %v1691, %v1689
        %v1726 = vpack.c.bf16 %v1694, %v1692
        %v1727 = vpack.c.bf16 %v1695, %v1693
        %v1728 = vld [vmem:[#allocation14] sm:$0xff]
        %v1729 = vld [vmem:[#allocation14 + $0x8] sm:$0xff]
        %v1730 = vld [vmem:[#allocation14 + $0x10] sm:$0xff]
        %v1731 = vld [vmem:[#allocation14 + $0x18] sm:$0xff]
        %v1732 = vld [vmem:[#allocation14 + $0x20] sm:$0xff]
        %v1733 = vld [vmem:[#allocation14 + $0x28] sm:$0xff]
        %v1734 = vld [vmem:[#allocation14 + $0x30] sm:$0xff]
        %v1735 = vld [vmem:[#allocation14 + $0x38] sm:$0xff]
        %v1736 = vld [vmem:[#allocation14 + $0x40] sm:$0xff]
        %v1737 = vld [vmem:[#allocation14 + $0x48] sm:$0xff]
        %v1738 = vld [vmem:[#allocation14 + $0x50] sm:$0xff]
        %v1739 = vld [vmem:[#allocation14 + $0x58] sm:$0xff]
        %v1740 = vld [vmem:[#allocation14 + $0x60] sm:$0xff]
        %v1741 = vld [vmem:[#allocation14 + $0x68] sm:$0xff]
        %v1742 = vld [vmem:[#allocation14 + $0x70] sm:$0xff]
        %v1743 = vld [vmem:[#allocation14 + $0x78] sm:$0xff]
        %v1744 = vld [vmem:[#allocation14 + $0x80] sm:$0xff]
        %v1745 = vld [vmem:[#allocation14 + $0x88] sm:$0xff]
        %v1746 = vld [vmem:[#allocation14 + $0x90] sm:$0xff]
        %v1747 = vld [vmem:[#allocation14 + $0x98] sm:$0xff]
        %v1748 = vld [vmem:[#allocation14 + $0xa0] sm:$0xff]
        %v1749 = vld [vmem:[#allocation14 + $0xa8] sm:$0xff]
        %v1750 = vld [vmem:[#allocation14 + $0xb0] sm:$0xff]
        %v1751 = vld [vmem:[#allocation14 + $0xb8] sm:$0xff]
        %v1752 = vld [vmem:[#allocation14 + $0xc0] sm:$0xff]
        %v1753 = vld [vmem:[#allocation14 + $0xc8] sm:$0xff]
        %v1754 = vld [vmem:[#allocation14 + $0xd0] sm:$0xff]
        %v1755 = vld [vmem:[#allocation14 + $0xd8] sm:$0xff]
        %v1756 = vld [vmem:[#allocation14 + $0xe0] sm:$0xff]
        %v1757 = vld [vmem:[#allocation14 + $0xe8] sm:$0xff]
        %v1758 = vld [vmem:[#allocation14 + $0xf0] sm:$0xff]
        %v1759 = vld [vmem:[#allocation14 + $0xf8] sm:$0xff]
        %1760 = vmatprep.subr.bf16.mxu0 0
        %1761 = vmatpush1.bf16.msra.mxu0 %v1472
        %1762 = vmatprep.subr.bf16.mxu0 0
        %1763 = vmatpush1.bf16.msra.mxu0 %v1473
        %1764 = vmatprep.subr.bf16.mxu0 0
        %1765 = vmatpush1.bf16.msra.mxu0 %v1474
        %1766 = vmatprep.subr.bf16.mxu0 0
        %1767 = vmatpush1.bf16.msra.mxu0 %v1475
        %1768 = vmatprep.subr.bf16.mxu0 0
        %1769 = vmatpush1.bf16.msra.mxu0 %v1476
        %1770 = vmatprep.subr.bf16.mxu0 0
        %1771 = vmatpush1.bf16.msra.mxu0 %v1477
        %1772 = vmatprep.subr.bf16.mxu0 0
        %1773 = vmatpush1.bf16.msra.mxu0 %v1478
        %1774 = vmatprep.subr.bf16.mxu0 0
        %1775 = vmatpush1.bf16.msra.mxu0 %v1479
        %1776 = vmatprep.subr.bf16.mxu0 0
        %1777 = vmatpush1.bf16.msra.mxu0 %v1480
        %1778 = vmatprep.subr.bf16.mxu0 0
        %1779 = vmatpush1.bf16.msra.mxu0 %v1481
        %1780 = vmatprep.subr.bf16.mxu0 0
        %1781 = vmatpush1.bf16.msra.mxu0 %v1482
        %1782 = vmatprep.subr.bf16.mxu0 0
        %1783 = vmatpush1.bf16.msra.mxu0 %v1483
        %1784 = vmatprep.subr.bf16.mxu0 0
        %1785 = vmatpush1.bf16.msra.mxu0 %v1484
        %1786 = vmatprep.subr.bf16.mxu0 0
        %1787 = vmatpush1.bf16.msra.mxu0 %v1485
        %1788 = vmatprep.subr.bf16.mxu0 0
        %1789 = vmatpush1.bf16.msra.mxu0 %v1486
        %1790 = vmatprep.subr.bf16.mxu0 0
        %1791 = vmatpush1.bf16.msra.mxu0 %v1487
        %1792 = vmatprep.mubr.bf16.mxu0 %v1697
        %1793 = vmatmul.mubr.bf16.gmra.mrb[0].mxu0 %v1696
        %v1794 = vpop.f32.mrb[0].mxu0
        %v1795 = vadd.f32 0.0, %v1794
        %v1796 = vpop.f32.mrb[0].mxu0
        %v1797 = vpop.f32.mrb[0].mxu0
        %v1798 = vadd.f32 0.0, %v1797
        %v1799 = vpop.f32.mrb[0].mxu0
        %1800 = vmatprep.mubr.bf16.mxu0 %v1699
        %1801 = vmatmul.mubr.bf16.gmra.mrb[0].mxu0 %v1698
        %v1802 = vpop.f32.mrb[0].mxu0
        %v1803 = vadd.f32 0.0, %v1802
        %v1804 = vpop.f32.mrb[0].mxu0
        %v1805 = vpop.f32.mrb[0].mxu0
        %v1806 = vadd.f32 0.0, %v1805
        %v1807 = vpop.f32.mrb[0].mxu0
        %1808 = vmatprep.mubr.bf16.mxu0 %v1701
        %1809 = vmatmul.mubr.bf16.gmra.mrb[0].mxu0 %v1700
        %v1810 = vpop.f32.mrb[0].mxu0
        %v1811 = vadd.f32 0.0, %v1810
        %v1812 = vpop.f32.mrb[0].mxu0
        %v1813 = vpop.f32.mrb[0].mxu0
        %v1814 = vadd.f32 0.0, %v1813
        %v1815 = vpop.f32.mrb[0].mxu0
        %1816 = vmatprep.mubr.bf16.mxu0 %v1703
        %1817 = vmatmul.mubr.bf16.gmra.mrb[0].mxu0 %v1702
        %v1818 = vpop.f32.mrb[0].mxu0
        %v1819 = vadd.f32 0.0, %v1818
        %v1820 = vpop.f32.mrb[0].mxu0
        %v1821 = vpop.f32.mrb[0].mxu0
        %v1822 = vadd.f32 0.0, %v1821
        %v1823 = vpop.f32.mrb[0].mxu0
        %1824 = vmatprep.mubr.bf16.mxu0 %v1705
        %1825 = vmatmul.mubr.bf16.gmra.mrb[0].mxu0 %v1704
        %v1826 = vpop.f32.mrb[0].mxu0
        %v1827 = vadd.f32 0.0, %v1826
        %v1828 = vpop.f32.mrb[0].mxu0
        %v1829 = vpop.f32.mrb[0].mxu0
        %v1830 = vadd.f32 0.0, %v1829
        %v1831 = vpop.f32.mrb[0].mxu0
        %1832 = vmatprep.mubr.bf16.mxu0 %v1707
        %1833 = vmatmul.mubr.bf16.gmra.mrb[0].mxu0 %v1706
        %v1834 = vpop.f32.mrb[0].mxu0
        %v1835 = vadd.f32 0.0, %v1834
        %v1836 = vpop.f32.mrb[0].mxu0
        %v1837 = vpop.f32.mrb[0].mxu0
        %v1838 = vadd.f32 0.0, %v1837
        %v1839 = vpop.f32.mrb[0].mxu0
        %1840 = vmatprep.mubr.bf16.mxu0 %v1709
        %1841 = vmatmul.mubr.bf16.gmra.mrb[0].mxu0 %v1708
        %v1842 = vpop.f32.mrb[0].mxu0
        %v1843 = vadd.f32 0.0, %v1842
        %v1844 = vpop.f32.mrb[0].mxu0
        %v1845 = vpop.f32.mrb[0].mxu0
        %v1846 = vadd.f32 0.0, %v1845
        %v1847 = vpop.f32.mrb[0].mxu0
        %1848 = vmatprep.mubr.bf16.mxu0 %v1711
        %1849 = vmatmul.mubr.bf16.gmra.mrb[0].mxu0 %v1710
        %v1850 = vpop.f32.mrb[0].mxu0
        %v1851 = vadd.f32 0.0, %v1850
        %v1852 = vpop.f32.mrb[0].mxu0
        %v1853 = vpop.f32.mrb[0].mxu0
        %v1854 = vadd.f32 0.0, %v1853
        %v1855 = vpop.f32.mrb[0].mxu0
        %1856 = vmatprep.mubr.bf16.mxu0 %v1713
        %1857 = vmatmul.mubr.bf16.gmra.mrb[0].mxu0 %v1712
        %v1858 = vpop.f32.mrb[0].mxu0
        %v1859 = vadd.f32 0.0, %v1858
        %v1860 = vpop.f32.mrb[0].mxu0
        %v1861 = vpop.f32.mrb[0].mxu0
        %v1862 = vadd.f32 0.0, %v1861
        %v1863 = vpop.f32.mrb[0].mxu0
        %1864 = vmatprep.mubr.bf16.mxu0 %v1715
        %1865 = vmatmul.mubr.bf16.gmra.mrb[0].mxu0 %v1714
        %v1866 = vpop.f32.mrb[0].mxu0
        %v1867 = vadd.f32 0.0, %v1866
        %v1868 = vpop.f32.mrb[0].mxu0
        %v1869 = vpop.f32.mrb[0].mxu0
        %v1870 = vadd.f32 0.0, %v1869
        %v1871 = vpop.f32.mrb[0].mxu0
        %1872 = vmatprep.mubr.bf16.mxu0 %v1717
        %1873 = vmatmul.mubr.bf16.gmra.mrb[0].mxu0 %v1716
        %v1874 = vpop.f32.mrb[0].mxu0
        %v1875 = vadd.f32 0.0, %v1874
        %v1876 = vpop.f32.mrb[0].mxu0
        %v1877 = vpop.f32.mrb[0].mxu0
        %v1878 = vadd.f32 0.0, %v1877
        %v1879 = vpop.f32.mrb[0].mxu0
        %1880 = vmatprep.mubr.bf16.mxu0 %v1719
        %1881 = vmatmul.mubr.bf16.gmra.mrb[0].mxu0 %v1718
        %v1882 = vpop.f32.mrb[0].mxu0
        %v1883 = vadd.f32 0.0, %v1882
        %v1884 = vpop.f32.mrb[0].mxu0
        %v1885 = vpop.f32.mrb[0].mxu0
        %v1886 = vadd.f32 0.0, %v1885
        %v1887 = vpop.f32.mrb[0].mxu0
        %1888 = vmatprep.mubr.bf16.mxu0 %v1721
        %1889 = vmatmul.mubr.bf16.gmra.mrb[0].mxu0 %v1720
        %v1890 = vpop.f32.mrb[0].mxu0
        %v1891 = vadd.f32 0.0, %v1890
        %v1892 = vpop.f32.mrb[0].mxu0
        %v1893 = vpop.f32.mrb[0].mxu0
        %v1894 = vadd.f32 0.0, %v1893
        %v1895 = vpop.f32.mrb[0].mxu0
        %1896 = vmatprep.mubr.bf16.mxu0 %v1723
        %1897 = vmatmul.mubr.bf16.gmra.mrb[0].mxu0 %v1722
        %v1898 = vpop.f32.mrb[0].mxu0
        %v1899 = vadd.f32 0.0, %v1898
        %v1900 = vpop.f32.mrb[0].mxu0
        %v1901 = vpop.f32.mrb[0].mxu0
        %v1902 = vadd.f32 0.0, %v1901
        %v1903 = vpop.f32.mrb[0].mxu0
        %1904 = vmatprep.mubr.bf16.mxu0 %v1725
        %1905 = vmatmul.mubr.bf16.gmra.mrb[0].mxu0 %v1724
        %v1906 = vpop.f32.mrb[0].mxu0
        %v1907 = vadd.f32 0.0, %v1906
        %v1908 = vpop.f32.mrb[0].mxu0
        %v1909 = vpop.f32.mrb[0].mxu0
        %v1910 = vadd.f32 0.0, %v1909
        %v1911 = vpop.f32.mrb[0].mxu0
        %1912 = vmatprep.mubr.bf16.mxu0 %v1727
        %1913 = vmatmul.mubr.bf16.gmra.mrb[0].mxu0 %v1726
        %v1914 = vpop.f32.mrb[0].mxu0
        %v1915 = vadd.f32 0.0, %v1914
        %v1916 = vpop.f32.mrb[0].mxu0
        %v1917 = vpop.f32.mrb[0].mxu0
        %v1918 = vadd.f32 0.0, %v1917
        %v1919 = vpop.f32.mrb[0].mxu0
        %1920 = vdwg.mxu0
        %v1921 = vadd.f32 %v1728, %v1795
        %v1922 = vadd.f32 %v1729, %v1798
        %v1923 = vadd.f32 %v1730, %v1803
        %v1924 = vadd.f32 %v1731, %v1806
        %v1925 = vadd.f32 %v1732, %v1811
        %v1926 = vadd.f32 %v1733, %v1814
        %v1927 = vadd.f32 %v1734, %v1819
        %v1928 = vadd.f32 %v1735, %v1822
        %v1929 = vadd.f32 %v1736, %v1827
        %v1930 = vadd.f32 %v1737, %v1830
        %v1931 = vadd.f32 %v1738, %v1835
        %v1932 = vadd.f32 %v1739, %v1838
        %v1933 = vadd.f32 %v1740, %v1843
        %v1934 = vadd.f32 %v1741, %v1846
        %v1935 = vadd.f32 %v1742, %v1851
        %v1936 = vadd.f32 %v1743, %v1854
        %v1937 = vadd.f32 %v1744, %v1859
        %v1938 = vadd.f32 %v1745, %v1862
        %v1939 = vadd.f32 %v1746, %v1867
        %v1940 = vadd.f32 %v1747, %v1870
        %v1941 = vadd.f32 %v1748, %v1875
        %v1942 = vadd.f32 %v1749, %v1878
        %v1943 = vadd.f32 %v1750, %v1883
        %v1944 = vadd.f32 %v1751, %v1886
        %v1945 = vadd.f32 %v1752, %v1891
        %v1946 = vadd.f32 %v1753, %v1894
        %v1947 = vadd.f32 %v1754, %v1899
        %v1948 = vadd.f32 %v1755, %v1902
        %v1949 = vadd.f32 %v1756, %v1907
        %v1950 = vadd.f32 %v1757, %v1910
        %v1951 = vadd.f32 %v1758, %v1915
        %v1952 = vadd.f32 %v1759, %v1918
        %1953 = vst [vmem:[#allocation14] sm:$0xff] %v1921
        %1954 = vst [vmem:[#allocation14 + $0x8] sm:$0xff] %v1922
        %1955 = vst [vmem:[#allocation14 + $0x10] sm:$0xff] %v1923
        %1956 = vst [vmem:[#allocation14 + $0x18] sm:$0xff] %v1924
        %1957 = vst [vmem:[#allocation14 + $0x20] sm:$0xff] %v1925
        %1958 = vst [vmem:[#allocation14 + $0x28] sm:$0xff] %v1926
        %1959 = vst [vmem:[#allocation14 + $0x30] sm:$0xff] %v1927
        %1960 = vst [vmem:[#allocation14 + $0x38] sm:$0xff] %v1928
        %1961 = vst [vmem:[#allocation14 + $0x40] sm:$0xff] %v1929
        %1962 = vst [vmem:[#allocation14 + $0x48] sm:$0xff] %v1930
        %1963 = vst [vmem:[#allocation14 + $0x50] sm:$0xff] %v1931
        %1964 = vst [vmem:[#allocation14 + $0x58] sm:$0xff] %v1932
        %1965 = vst [vmem:[#allocation14 + $0x60] sm:$0xff] %v1933
        %1966 = vst [vmem:[#allocation14 + $0x68] sm:$0xff] %v1934
        %1967 = vst [vmem:[#allocation14 + $0x70] sm:$0xff] %v1935
        %1968 = vst [vmem:[#allocation14 + $0x78] sm:$0xff] %v1936
        %1969 = vst [vmem:[#allocation14 + $0x80] sm:$0xff] %v1937
        %1970 = vst [vmem:[#allocation14 + $0x88] sm:$0xff] %v1938
        %1971 = vst [vmem:[#allocation14 + $0x90] sm:$0xff] %v1939
        %1972 = vst [vmem:[#allocation14 + $0x98] sm:$0xff] %v1940
        %1973 = vst [vmem:[#allocation14 + $0xa0] sm:$0xff] %v1941
        %1974 = vst [vmem:[#allocation14 + $0xa8] sm:$0xff] %v1942
        %1975 = vst [vmem:[#allocation14 + $0xb0] sm:$0xff] %v1943
        %1976 = vst [vmem:[#allocation14 + $0xb8] sm:$0xff] %v1944
        %1977 = vst [vmem:[#allocation14 + $0xc0] sm:$0xff] %v1945
        %1978 = vst [vmem:[#allocation14 + $0xc8] sm:$0xff] %v1946
        %1979 = vst [vmem:[#allocation14 + $0xd0] sm:$0xff] %v1947
        %1980 = vst [vmem:[#allocation14 + $0xd8] sm:$0xff] %v1948
        %1981 = vst [vmem:[#allocation14 + $0xe0] sm:$0xff] %v1949
        %1982 = vst [vmem:[#allocation14 + $0xe8] sm:$0xff] %v1950
        %1983 = vst [vmem:[#allocation14 + $0xf0] sm:$0xff] %v1951
        %1984 = vst [vmem:[#allocation14 + $0xf8] sm:$0xff] %v1952
        %p1985 = scmp.eq.s32.totalorder %s25, 2
        // Predicated region
        $region81: #{block2d_forward.1} parent=47 // pred_check
          %p1986 = pneg %p1985
        $region82: #{block2d_forward.1} parent=47 // pred_check_branch
          %1988 = sbr.rel (%p1986) target = $region84
        $region83: #{block2d_forward.1} parent=47 // pred_region
          %v1989 = vld [vmem:[#allocation14] sm:$0xff]
          %v1990 = vld [vmem:[#allocation14 + $0x8] sm:$0xff]
          %v1991 = vld [vmem:[#allocation14 + $0x10] sm:$0xff]
          %v1992 = vld [vmem:[#allocation14 + $0x18] sm:$0xff]
          %v1993 = vld [vmem:[#allocation14 + $0x20] sm:$0xff]
          %v1994 = vld [vmem:[#allocation14 + $0x28] sm:$0xff]
          %v1995 = vld [vmem:[#allocation14 + $0x30] sm:$0xff]
          %v1996 = vld [vmem:[#allocation14 + $0x38] sm:$0xff]
          %v1997 = vld [vmem:[#allocation14 + $0x40] sm:$0xff]
          %v1998 = vld [vmem:[#allocation14 + $0x48] sm:$0xff]
          %v1999 = vld [vmem:[#allocation14 + $0x50] sm:$0xff]
          %v2000 = vld [vmem:[#allocation14 + $0x58] sm:$0xff]
          %v2001 = vld [vmem:[#allocation14 + $0x60] sm:$0xff]
          %v2002 = vld [vmem:[#allocation14 + $0x68] sm:$0xff]
          %v2003 = vld [vmem:[#allocation14 + $0x70] sm:$0xff]
          %v2004 = vld [vmem:[#allocation14 + $0x78] sm:$0xff]
          %v2005 = vld [vmem:[#allocation14 + $0x80] sm:$0xff]
          %v2006 = vld [vmem:[#allocation14 + $0x88] sm:$0xff]
          %v2007 = vld [vmem:[#allocation14 + $0x90] sm:$0xff]
          %v2008 = vld [vmem:[#allocation14 + $0x98] sm:$0xff]
          %v2009 = vld [vmem:[#allocation14 + $0xa0] sm:$0xff]
          %v2010 = vld [vmem:[#allocation14 + $0xa8] sm:$0xff]
          %v2011 = vld [vmem:[#allocation14 + $0xb0] sm:$0xff]
          %v2012 = vld [vmem:[#allocation14 + $0xb8] sm:$0xff]
          %v2013 = vld [vmem:[#allocation14 + $0xc0] sm:$0xff]
          %v2014 = vld [vmem:[#allocation14 + $0xc8] sm:$0xff]
          %v2015 = vld [vmem:[#allocation14 + $0xd0] sm:$0xff]
          %v2016 = vld [vmem:[#allocation14 + $0xd8] sm:$0xff]
          %v2017 = vld [vmem:[#allocation14 + $0xe0] sm:$0xff]
          %v2018 = vld [vmem:[#allocation14 + $0xe8] sm:$0xff]
          %v2019 = vld [vmem:[#allocation14 + $0xf0] sm:$0xff]
          %v2020 = vld [vmem:[#allocation14 + $0xf8] sm:$0xff]
          %v2021 = vld [vmem:[#allocation8] sm:$0xff]
          %v2022 = vld [vmem:[#allocation8 + $0x8] sm:$0xff]
          %v2023 = vld [vmem:[#allocation8 + $0x10] sm:$0xff]
          %v2024 = vld [vmem:[#allocation8 + $0x18] sm:$0xff]
          %v2025 = vld [vmem:[#allocation8 + $0x20] sm:$0xff]
          %v2026 = vld [vmem:[#allocation8 + $0x28] sm:$0xff]
          %v2027 = vld [vmem:[#allocation8 + $0x30] sm:$0xff]
          %v2028 = vld [vmem:[#allocation8 + $0x38] sm:$0xff]
          %v2029 = vld [vmem:[#allocation8 + $0x40] sm:$0xff]
          %v2030 = vld [vmem:[#allocation8 + $0x48] sm:$0xff]
          %v2031 = vld [vmem:[#allocation8 + $0x50] sm:$0xff]
          %v2032 = vld [vmem:[#allocation8 + $0x58] sm:$0xff]
          %v2033 = vld [vmem:[#allocation8 + $0x60] sm:$0xff]
          %v2034 = vld [vmem:[#allocation8 + $0x68] sm:$0xff]
          %v2035 = vld [vmem:[#allocation8 + $0x70] sm:$0xff]
          %v2036 = vld [vmem:[#allocation8 + $0x78] sm:$0xff]
          %v2037 = vld [vmem:[#allocation10] sm:$0x1]
          %v2039 = vlaneseq
          %v2040 = vshrl.u32 %v2039, 7
          %v2041 = vsub.s32 0, %v2040
          %v2042 = vrot.slane %v2037, %v2041
          %2044 = vmatprep.subr.mxu0 0.0
          %2045 = vmatpush1.msra.mxu0 %v2021
          %2046 = vmatprep.subr.mxu0 0.0
          %2047 = vmatpush1.msra.mxu0 %v2022
          %2048 = vmatprep.subr.mxu0 0.0
          %2049 = vmatpush1.msra.mxu0 %v2023
          %2050 = vmatprep.subr.mxu0 0.0
          %2051 = vmatpush1.msra.mxu0 %v2024
          %2052 = vmatprep.subr.mxu0 0.0
          %2053 = vmatpush1.msra.mxu0 %v2025
          %2054 = vmatprep.subr.mxu0 0.0
          %2055 = vmatpush1.msra.mxu0 %v2026
          %2056 = vmatprep.subr.mxu0 0.0
          %2057 = vmatpush1.msra.mxu0 %v2027
          %2058 = vmatprep.subr.mxu0 0.0
          %2059 = vmatpush1.msra.mxu0 %v2028
          %2060 = vmatprep.subr.mxu0 0.0
          %2061 = vmatpush1.msra.mxu0 %v2029
          %2062 = vmatprep.subr.mxu0 0.0
          %2063 = vmatpush1.msra.mxu0 %v2030
          %2064 = vmatprep.subr.mxu0 0.0
          %2065 = vmatpush1.msra.mxu0 %v2031
          %2066 = vmatprep.subr.mxu0 0.0
          %2067 = vmatpush1.msra.mxu0 %v2032
          %2068 = vmatprep.subr.mxu0 0.0
          %2069 = vmatpush1.msra.mxu0 %v2033
          %2070 = vmatprep.subr.mxu0 0.0
          %2071 = vmatpush1.msra.mxu0 %v2034
          %2072 = vmatprep.subr.mxu0 0.0
          %2073 = vmatpush1.msra.mxu0 %v2035
          %2074 = vmatprep.subr.mxu0 0.0
          %2075 = vmatpush1.msra.mxu0 %v2036
          %2076 = vmatprep.subr.mxu0 0.0
          %2077 = vmatpush1.msra.mxu0 0.0
          %2078 = vmatprep.subr.mxu0 0.0
          %2079 = vmatpush1.msra.mxu0 0.0
          %2080 = vmatprep.subr.mxu0 0.0
          %2081 = vmatpush1.msra.mxu0 0.0
          %2082 = vmatprep.subr.mxu0 0.0
          %2083 = vmatpush1.msra.mxu0 0.0
          %2084 = vmatprep.subr.mxu0 0.0
          %2085 = vmatpush1.msra.mxu0 0.0
          %2086 = vmatprep.subr.mxu0 0.0
          %2087 = vmatpush1.msra.mxu0 0.0
          %2088 = vmatprep.subr.mxu0 0.0
          %2089 = vmatpush1.msra.mxu0 0.0
          %2090 = vmatprep.subr.mxu0 0.0
          %2091 = vmatpush1.msra.mxu0 0.0
          %2092 = vmatprep.subr.mxu0 0.0
          %2093 = vmatpush1.msra.mxu0 0.0
          %2094 = vmatprep.subr.mxu0 0.0
          %2095 = vmatpush1.msra.mxu0 0.0
          %2096 = vmatprep.subr.mxu0 0.0
          %2097 = vmatpush1.msra.mxu0 0.0
          %2098 = vmatprep.subr.mxu0 0.0
          %2099 = vmatpush1.msra.mxu0 0.0
          %2100 = vmatprep.subr.mxu0 0.0
          %2101 = vmatpush1.msra.mxu0 0.0
          %2102 = vmatprep.subr.mxu0 0.0
          %2103 = vmatpush1.msra.mxu0 0.0
          %2104 = vmatprep.subr.mxu0 0.0
          %2105 = vmatpush1.msra.mxu0 0.0
          %2106 = vmatprep.subr.mxu0 0.0
          %2107 = vmatpush1.msra.mxu0 0.0
          %2108 = vmatprep.mubr.f32.mxu0 0.0
          %2109 = vmatmul.mubr.f32.gmra.mrb[0].mxu0 %v1989
          %v2110 = vpop.f32.mrb[0].mxu0
          %v2111 = vadd.f32 %v2042, %v2110
          %v2112 = vpop.f32.mrb[0].mxu0
          %2113 = vmatprep.mubr.f32.mxu0 0.0
          %2114 = vmatmul.mubr.f32.gmra.mrb[0].mxu0 %v1990
          %v2115 = vpop.f32.mrb[0].mxu0
          %v2116 = vadd.f32 %v2042, %v2115
          %v2117 = vpop.f32.mrb[0].mxu0
          %2118 = vmatprep.mubr.f32.mxu0 0.0
          %2119 = vmatmul.mubr.f32.gmra.mrb[0].mxu0 %v1991
          %v2120 = vpop.f32.mrb[0].mxu0
          %v2121 = vadd.f32 %v2042, %v2120
          %v2122 = vpop.f32.mrb[0].mxu0
          %2123 = vmatprep.mubr.f32.mxu0 0.0
          %2124 = vmatmul.mubr.f32.gmra.mrb[0].mxu0 %v1992
          %v2125 = vpop.f32.mrb[0].mxu0
          %v2126 = vadd.f32 %v2042, %v2125
          %v2127 = vpop.f32.mrb[0].mxu0
          %2128 = vmatprep.mubr.f32.mxu0 0.0
          %2129 = vmatmul.mubr.f32.gmra.mrb[0].mxu0 %v1993
          %v2130 = vpop.f32.mrb[0].mxu0
          %v2131 = vadd.f32 %v2042, %v2130
          %v2132 = vpop.f32.mrb[0].mxu0
          %2133 = vmatprep.mubr.f32.mxu0 0.0
          %2134 = vmatmul.mubr.f32.gmra.mrb[0].mxu0 %v1994
          %v2135 = vpop.f32.mrb[0].mxu0
          %v2136 = vadd.f32 %v2042, %v2135
          %v2137 = vpop.f32.mrb[0].mxu0
          %2138 = vmatprep.mubr.f32.mxu0 0.0
          %2139 = vmatmul.mubr.f32.gmra.mrb[0].mxu0 %v1995
          %v2140 = vpop.f32.mrb[0].mxu0
          %v2141 = vadd.f32 %v2042, %v2140
          %v2142 = vpop.f32.mrb[0].mxu0
          %2143 = vmatprep.mubr.f32.mxu0 0.0
          %2144 = vmatmul.mubr.f32.gmra.mrb[0].mxu0 %v1996
          %v2145 = vpop.f32.mrb[0].mxu0
          %v2146 = vadd.f32 %v2042, %v2145
          %v2147 = vpop.f32.mrb[0].mxu0
          %2148 = vmatprep.mubr.f32.mxu0 0.0
          %2149 = vmatmul.mubr.f32.gmra.mrb[0].mxu0 %v1997
          %v2150 = vpop.f32.mrb[0].mxu0
          %v2151 = vadd.f32 %v2042, %v2150
          %v2152 = vpop.f32.mrb[0].mxu0
          %2153 = vmatprep.mubr.f32.mxu0 0.0
          %2154 = vmatmul.mubr.f32.gmra.mrb[0].mxu0 %v1998
          %v2155 = vpop.f32.mrb[0].mxu0
          %v2156 = vadd.f32 %v2042, %v2155
          %v2157 = vpop.f32.mrb[0].mxu0
          %2158 = vmatprep.mubr.f32.mxu0 0.0
          %2159 = vmatmul.mubr.f32.gmra.mrb[0].mxu0 %v1999
          %v2160 = vpop.f32.mrb[0].mxu0
          %v2161 = vadd.f32 %v2042, %v2160
          %v2162 = vpop.f32.mrb[0].mxu0
          %2163 = vmatprep.mubr.f32.mxu0 0.0
          %2164 = vmatmul.mubr.f32.gmra.mrb[0].mxu0 %v2000
          %v2165 = vpop.f32.mrb[0].mxu0
          %v2166 = vadd.f32 %v2042, %v2165
          %v2167 = vpop.f32.mrb[0].mxu0
          %2168 = vmatprep.mubr.f32.mxu0 0.0
          %2169 = vmatmul.mubr.f32.gmra.mrb[0].mxu0 %v2001
          %v2170 = vpop.f32.mrb[0].mxu0
          %v2171 = vadd.f32 %v2042, %v2170
          %v2172 = vpop.f32.mrb[0].mxu0
          %2173 = vmatprep.mubr.f32.mxu0 0.0
          %2174 = vmatmul.mubr.f32.gmra.mrb[0].mxu0 %v2002
          %v2175 = vpop.f32.mrb[0].mxu0
          %v2176 = vadd.f32 %v2042, %v2175
          %v2177 = vpop.f32.mrb[0].mxu0
          %2178 = vmatprep.mubr.f32.mxu0 0.0
          %2179 = vmatmul.mubr.f32.gmra.mrb[0].mxu0 %v2003
          %v2180 = vpop.f32.mrb[0].mxu0
          %v2181 = vadd.f32 %v2042, %v2180
          %v2182 = vpop.f32.mrb[0].mxu0
          %2183 = vmatprep.mubr.f32.mxu0 0.0
          %2184 = vmatmul.mubr.f32.gmra.mrb[0].mxu0 %v2004
          %v2185 = vpop.f32.mrb[0].mxu0
          %v2186 = vadd.f32 %v2042, %v2185
          %v2187 = vpop.f32.mrb[0].mxu0
          %2188 = vmatprep.mubr.f32.mxu0 0.0
          %2189 = vmatmul.mubr.f32.gmra.mrb[0].mxu0 %v2005
          %v2190 = vpop.f32.mrb[0].mxu0
          %v2191 = vadd.f32 %v2042, %v2190
          %v2192 = vpop.f32.mrb[0].mxu0
          %2193 = vmatprep.mubr.f32.mxu0 0.0
          %2194 = vmatmul.mubr.f32.gmra.mrb[0].mxu0 %v2006
          %v2195 = vpop.f32.mrb[0].mxu0
          %v2196 = vadd.f32 %v2042, %v2195
          %v2197 = vpop.f32.mrb[0].mxu0
          %2198 = vmatprep.mubr.f32.mxu0 0.0
          %2199 = vmatmul.mubr.f32.gmra.mrb[0].mxu0 %v2007
          %v2200 = vpop.f32.mrb[0].mxu0
          %v2201 = vadd.f32 %v2042, %v2200
          %v2202 = vpop.f32.mrb[0].mxu0
          %2203 = vmatprep.mubr.f32.mxu0 0.0
          %2204 = vmatmul.mubr.f32.gmra.mrb[0].mxu0 %v2008
          %v2205 = vpop.f32.mrb[0].mxu0
          %v2206 = vadd.f32 %v2042, %v2205
          %v2207 = vpop.f32.mrb[0].mxu0
          %2208 = vmatprep.mubr.f32.mxu0 0.0
          %2209 = vmatmul.mubr.f32.gmra.mrb[0].mxu0 %v2009
          %v2210 = vpop.f32.mrb[0].mxu0
          %v2211 = vadd.f32 %v2042, %v2210
          %v2212 = vpop.f32.mrb[0].mxu0
          %2213 = vmatprep.mubr.f32.mxu0 0.0
          %2214 = vmatmul.mubr.f32.gmra.mrb[0].mxu0 %v2010
          %v2215 = vpop.f32.mrb[0].mxu0
          %v2216 = vadd.f32 %v2042, %v2215
          %v2217 = vpop.f32.mrb[0].mxu0
          %2218 = vmatprep.mubr.f32.mxu0 0.0
          %2219 = vmatmul.mubr.f32.gmra.mrb[0].mxu0 %v2011
          %v2220 = vpop.f32.mrb[0].mxu0
          %v2221 = vadd.f32 %v2042, %v2220
          %v2222 = vpop.f32.mrb[0].mxu0
          %2223 = vmatprep.mubr.f32.mxu0 0.0
          %2224 = vmatmul.mubr.f32.gmra.mrb[0].mxu0 %v2012
          %v2225 = vpop.f32.mrb[0].mxu0
          %v2226 = vadd.f32 %v2042, %v2225
          %v2227 = vpop.f32.mrb[0].mxu0
          %2228 = vmatprep.mubr.f32.mxu0 0.0
          %2229 = vmatmul.mubr.f32.gmra.mrb[0].mxu0 %v2013
          %v2230 = vpop.f32.mrb[0].mxu0
          %v2231 = vadd.f32 %v2042, %v2230
          %v2232 = vpop.f32.mrb[0].mxu0
          %2233 = vmatprep.mubr.f32.mxu0 0.0
          %2234 = vmatmul.mubr.f32.gmra.mrb[0].mxu0 %v2014
          %v2235 = vpop.f32.mrb[0].mxu0
          %v2236 = vadd.f32 %v2042, %v2235
          %v2237 = vpop.f32.mrb[0].mxu0
          %2238 = vmatprep.mubr.f32.mxu0 0.0
          %2239 = vmatmul.mubr.f32.gmra.mrb[0].mxu0 %v2015
          %v2240 = vpop.f32.mrb[0].mxu0
          %v2241 = vadd.f32 %v2042, %v2240
          %v2242 = vpop.f32.mrb[0].mxu0
          %2243 = vmatprep.mubr.f32.mxu0 0.0
          %2244 = vmatmul.mubr.f32.gmra.mrb[0].mxu0 %v2016
          %v2245 = vpop.f32.mrb[0].mxu0
          %v2246 = vadd.f32 %v2042, %v2245
          %v2247 = vpop.f32.mrb[0].mxu0
          %2248 = vmatprep.mubr.f32.mxu0 0.0
          %2249 = vmatmul.mubr.f32.gmra.mrb[0].mxu0 %v2017
          %v2250 = vpop.f32.mrb[0].mxu0
          %v2251 = vadd.f32 %v2042, %v2250
          %v2252 = vpop.f32.mrb[0].mxu0
          %2253 = vmatprep.mubr.f32.mxu0 0.0
          %2254 = vmatmul.mubr.f32.gmra.mrb[0].mxu0 %v2018
          %v2255 = vpop.f32.mrb[0].mxu0
          %v2256 = vadd.f32 %v2042, %v2255
          %v2257 = vpop.f32.mrb[0].mxu0
          %2258 = vmatprep.mubr.f32.mxu0 0.0
          %2259 = vmatmul.mubr.f32.gmra.mrb[0].mxu0 %v2019
          %v2260 = vpop.f32.mrb[0].mxu0
          %v2261 = vadd.f32 %v2042, %v2260
          %v2262 = vpop.f32.mrb[0].mxu0
          %2263 = vmatprep.mubr.f32.mxu0 0.0
          %2264 = vmatmul.mubr.f32.gmra.mrb[0].mxu0 %v2020
          %v2265 = vpop.f32.mrb[0].mxu0
          %v2266 = vadd.f32 %v2042, %v2265
          %v2267 = vpop.f32.mrb[0].mxu0
          %2268 = vdwg.mxu0
          %v2269 = vmax.f32 %v2111, 0.0
          %v2270 = vmax.f32 %v2116, 0.0
          %v2271 = vmax.f32 %v2121, 0.0
          %v2272 = vmax.f32 %v2126, 0.0
          %v2273 = vmax.f32 %v2131, 0.0
          %v2274 = vmax.f32 %v2136, 0.0
          %v2275 = vmax.f32 %v2141, 0.0
          %v2276 = vmax.f32 %v2146, 0.0
          %v2277 = vmax.f32 %v2151, 0.0
          %v2278 = vmax.f32 %v2156, 0.0
          %v2279 = vmax.f32 %v2161, 0.0
          %v2280 = vmax.f32 %v2166, 0.0
          %v2281 = vmax.f32 %v2171, 0.0
          %v2282 = vmax.f32 %v2176, 0.0
          %v2283 = vmax.f32 %v2181, 0.0
          %v2284 = vmax.f32 %v2186, 0.0
          %v2285 = vmax.f32 %v2191, 0.0
          %v2286 = vmax.f32 %v2196, 0.0
          %v2287 = vmax.f32 %v2201, 0.0
          %v2288 = vmax.f32 %v2206, 0.0
          %v2289 = vmax.f32 %v2211, 0.0
          %v2290 = vmax.f32 %v2216, 0.0
          %v2291 = vmax.f32 %v2221, 0.0
          %v2292 = vmax.f32 %v2226, 0.0
          %v2293 = vmax.f32 %v2231, 0.0
          %v2294 = vmax.f32 %v2236, 0.0
          %v2295 = vmax.f32 %v2241, 0.0
          %v2296 = vmax.f32 %v2246, 0.0
          %v2297 = vmax.f32 %v2251, 0.0
          %v2298 = vmax.f32 %v2256, 0.0
          %v2299 = vmax.f32 %v2261, 0.0
          %v2300 = vmax.f32 %v2266, 0.0
          %v2301 = vld [vmem:[#allocation11] sm:$0xff]
          %v2302 = vld [vmem:[#allocation11 + $0x8] sm:$0xff]
          %v2303 = vld [vmem:[#allocation11 + $0x10] sm:$0xff]
          %v2304 = vld [vmem:[#allocation11 + $0x18] sm:$0xff]
          %v2305 = vld [vmem:[#allocation11 + $0x20] sm:$0xff]
          %v2306 = vld [vmem:[#allocation11 + $0x28] sm:$0xff]
          %v2307 = vld [vmem:[#allocation11 + $0x30] sm:$0xff]
          %v2308 = vld [vmem:[#allocation11 + $0x38] sm:$0xff]
          %v2309 = vld [vmem:[#allocation11 + $0x40] sm:$0xff]
          %v2310 = vld [vmem:[#allocation11 + $0x48] sm:$0xff]
          %v2311 = vld [vmem:[#allocation11 + $0x50] sm:$0xff]
          %v2312 = vld [vmem:[#allocation11 + $0x58] sm:$0xff]
          %v2313 = vld [vmem:[#allocation11 + $0x60] sm:$0xff]
          %v2314 = vld [vmem:[#allocation11 + $0x68] sm:$0xff]
          %v2315 = vld [vmem:[#allocation11 + $0x70] sm:$0xff]
          %v2316 = vld [vmem:[#allocation11 + $0x78] sm:$0xff]
          %v2317 = vld [vmem:[#allocation13] sm:$0x1]
          %v2319 = vlaneseq
          %v2320 = vshrl.u32 %v2319, 7
          %v2321 = vsub.s32 0, %v2320
          %v2322 = vrot.slane %v2317, %v2321
          %2324 = vmatprep.subr.mxu0 0.0
          %2325 = vmatpush1.msra.mxu0 %v2301
          %2326 = vmatprep.subr.mxu0 0.0
          %2327 = vmatpush1.msra.mxu0 %v2302
          %2328 = vmatprep.subr.mxu0 0.0
          %2329 = vmatpush1.msra.mxu0 %v2303
          %2330 = vmatprep.subr.mxu0 0.0
          %2331 = vmatpush1.msra.mxu0 %v2304
          %2332 = vmatprep.subr.mxu0 0.0
          %2333 = vmatpush1.msra.mxu0 %v2305
          %2334 = vmatprep.subr.mxu0 0.0
          %2335 = vmatpush1.msra.mxu0 %v2306
          %2336 = vmatprep.subr.mxu0 0.0
          %2337 = vmatpush1.msra.mxu0 %v2307
          %2338 = vmatprep.subr.mxu0 0.0
          %2339 = vmatpush1.msra.mxu0 %v2308
          %2340 = vmatprep.subr.mxu0 0.0
          %2341 = vmatpush1.msra.mxu0 %v2309
          %2342 = vmatprep.subr.mxu0 0.0
          %2343 = vmatpush1.msra.mxu0 %v2310
          %2344 = vmatprep.subr.mxu0 0.0
          %2345 = vmatpush1.msra.mxu0 %v2311
          %2346 = vmatprep.subr.mxu0 0.0
          %2347 = vmatpush1.msra.mxu0 %v2312
          %2348 = vmatprep.subr.mxu0 0.0
          %2349 = vmatpush1.msra.mxu0 %v2313
          %2350 = vmatprep.subr.mxu0 0.0
          %2351 = vmatpush1.msra.mxu0 %v2314
          %2352 = vmatprep.subr.mxu0 0.0
          %2353 = vmatpush1.msra.mxu0 %v2315
          %2354 = vmatprep.subr.mxu0 0.0
          %2355 = vmatpush1.msra.mxu0 %v2316
          %2356 = vmatprep.subr.mxu0 0.0
          %2357 = vmatpush1.msra.mxu0 0.0
          %2358 = vmatprep.subr.mxu0 0.0
          %2359 = vmatpush1.msra.mxu0 0.0
          %2360 = vmatprep.subr.mxu0 0.0
          %2361 = vmatpush1.msra.mxu0 0.0
          %2362 = vmatprep.subr.mxu0 0.0
          %2363 = vmatpush1.msra.mxu0 0.0
          %2364 = vmatprep.subr.mxu0 0.0
          %2365 = vmatpush1.msra.mxu0 0.0
          %2366 = vmatprep.subr.mxu0 0.0
          %2367 = vmatpush1.msra.mxu0 0.0
          %2368 = vmatprep.subr.mxu0 0.0
          %2369 = vmatpush1.msra.mxu0 0.0
          %2370 = vmatprep.subr.mxu0 0.0
          %2371 = vmatpush1.msra.mxu0 0.0
          %2372 = vmatprep.subr.mxu0 0.0
          %2373 = vmatpush1.msra.mxu0 0.0
          %2374 = vmatprep.subr.mxu0 0.0
          %2375 = vmatpush1.msra.mxu0 0.0
          %2376 = vmatprep.subr.mxu0 0.0
          %2377 = vmatpush1.msra.mxu0 0.0
          %2378 = vmatprep.subr.mxu0 0.0
          %2379 = vmatpush1.msra.mxu0 0.0
          %2380 = vmatprep.subr.mxu0 0.0
          %2381 = vmatpush1.msra.mxu0 0.0
          %2382 = vmatprep.subr.mxu0 0.0
          %2383 = vmatpush1.msra.mxu0 0.0
          %2384 = vmatprep.subr.mxu0 0.0
          %2385 = vmatpush1.msra.mxu0 0.0
          %2386 = vmatprep.subr.mxu0 0.0
          %2387 = vmatpush1.msra.mxu0 0.0
          %2388 = vmatprep.mubr.f32.mxu0 0.0
          %2389 = vmatmul.mubr.f32.gmra.mrb[0].mxu0 %v2269
          %v2390 = vpop.f32.mrb[0].mxu0
          %v2391 = vadd.f32 %v2322, %v2390
          %v2392 = vpop.f32.mrb[0].mxu0
          %2393 = vmatprep.mubr.f32.mxu0 0.0
          %2394 = vmatmul.mubr.f32.gmra.mrb[0].mxu0 %v2270
          %v2395 = vpop.f32.mrb[0].mxu0
          %v2396 = vadd.f32 %v2322, %v2395
          %v2397 = vpop.f32.mrb[0].mxu0
          %2398 = vmatprep.mubr.f32.mxu0 0.0
          %2399 = vmatmul.mubr.f32.gmra.mrb[0].mxu0 %v2271
          %v2400 = vpop.f32.mrb[0].mxu0
          %v2401 = vadd.f32 %v2322, %v2400
          %v2402 = vpop.f32.mrb[0].mxu0
          %2403 = vmatprep.mubr.f32.mxu0 0.0
          %2404 = vmatmul.mubr.f32.gmra.mrb[0].mxu0 %v2272
          %v2405 = vpop.f32.mrb[0].mxu0
          %v2406 = vadd.f32 %v2322, %v2405
          %v2407 = vpop.f32.mrb[0].mxu0
          %2408 = vmatprep.mubr.f32.mxu0 0.0
          %2409 = vmatmul.mubr.f32.gmra.mrb[0].mxu0 %v2273
          %v2410 = vpop.f32.mrb[0].mxu0
          %v2411 = vadd.f32 %v2322, %v2410
          %v2412 = vpop.f32.mrb[0].mxu0
          %2413 = vmatprep.mubr.f32.mxu0 0.0
          %2414 = vmatmul.mubr.f32.gmra.mrb[0].mxu0 %v2274
          %v2415 = vpop.f32.mrb[0].mxu0
          %v2416 = vadd.f32 %v2322, %v2415
          %v2417 = vpop.f32.mrb[0].mxu0
          %2418 = vmatprep.mubr.f32.mxu0 0.0
          %2419 = vmatmul.mubr.f32.gmra.mrb[0].mxu0 %v2275
          %v2420 = vpop.f32.mrb[0].mxu0
          %v2421 = vadd.f32 %v2322, %v2420
          %v2422 = vpop.f32.mrb[0].mxu0
          %2423 = vmatprep.mubr.f32.mxu0 0.0
          %2424 = vmatmul.mubr.f32.gmra.mrb[0].mxu0 %v2276
          %v2425 = vpop.f32.mrb[0].mxu0
          %v2426 = vadd.f32 %v2322, %v2425
          %v2427 = vpop.f32.mrb[0].mxu0
          %2428 = vmatprep.mubr.f32.mxu0 0.0
          %2429 = vmatmul.mubr.f32.gmra.mrb[0].mxu0 %v2277
          %v2430 = vpop.f32.mrb[0].mxu0
          %v2431 = vadd.f32 %v2322, %v2430
          %v2432 = vpop.f32.mrb[0].mxu0
          %2433 = vmatprep.mubr.f32.mxu0 0.0
          %2434 = vmatmul.mubr.f32.gmra.mrb[0].mxu0 %v2278
          %v2435 = vpop.f32.mrb[0].mxu0
          %v2436 = vadd.f32 %v2322, %v2435
          %v2437 = vpop.f32.mrb[0].mxu0
          %2438 = vmatprep.mubr.f32.mxu0 0.0
          %2439 = vmatmul.mubr.f32.gmra.mrb[0].mxu0 %v2279
          %v2440 = vpop.f32.mrb[0].mxu0
          %v2441 = vadd.f32 %v2322, %v2440
          %v2442 = vpop.f32.mrb[0].mxu0
          %2443 = vmatprep.mubr.f32.mxu0 0.0
          %2444 = vmatmul.mubr.f32.gmra.mrb[0].mxu0 %v2280
          %v2445 = vpop.f32.mrb[0].mxu0
          %v2446 = vadd.f32 %v2322, %v2445
          %v2447 = vpop.f32.mrb[0].mxu0
          %2448 = vmatprep.mubr.f32.mxu0 0.0
          %2449 = vmatmul.mubr.f32.gmra.mrb[0].mxu0 %v2281
          %v2450 = vpop.f32.mrb[0].mxu0
          %v2451 = vadd.f32 %v2322, %v2450
          %v2452 = vpop.f32.mrb[0].mxu0
          %2453 = vmatprep.mubr.f32.mxu0 0.0
          %2454 = vmatmul.mubr.f32.gmra.mrb[0].mxu0 %v2282
          %v2455 = vpop.f32.mrb[0].mxu0
          %v2456 = vadd.f32 %v2322, %v2455
          %v2457 = vpop.f32.mrb[0].mxu0
          %2458 = vmatprep.mubr.f32.mxu0 0.0
          %2459 = vmatmul.mubr.f32.gmra.mrb[0].mxu0 %v2283
          %v2460 = vpop.f32.mrb[0].mxu0
          %v2461 = vadd.f32 %v2322, %v2460
          %v2462 = vpop.f32.mrb[0].mxu0
          %2463 = vmatprep.mubr.f32.mxu0 0.0
          %2464 = vmatmul.mubr.f32.gmra.mrb[0].mxu0 %v2284
          %v2465 = vpop.f32.mrb[0].mxu0
          %v2466 = vadd.f32 %v2322, %v2465
          %v2467 = vpop.f32.mrb[0].mxu0
          %2468 = vmatprep.mubr.f32.mxu0 0.0
          %2469 = vmatmul.mubr.f32.gmra.mrb[0].mxu0 %v2285
          %v2470 = vpop.f32.mrb[0].mxu0
          %v2471 = vadd.f32 %v2322, %v2470
          %v2472 = vpop.f32.mrb[0].mxu0
          %2473 = vmatprep.mubr.f32.mxu0 0.0
          %2474 = vmatmul.mubr.f32.gmra.mrb[0].mxu0 %v2286
          %v2475 = vpop.f32.mrb[0].mxu0
          %v2476 = vadd.f32 %v2322, %v2475
          %v2477 = vpop.f32.mrb[0].mxu0
          %2478 = vmatprep.mubr.f32.mxu0 0.0
          %2479 = vmatmul.mubr.f32.gmra.mrb[0].mxu0 %v2287
          %v2480 = vpop.f32.mrb[0].mxu0
          %v2481 = vadd.f32 %v2322, %v2480
          %v2482 = vpop.f32.mrb[0].mxu0
          %2483 = vmatprep.mubr.f32.mxu0 0.0
          %2484 = vmatmul.mubr.f32.gmra.mrb[0].mxu0 %v2288
          %v2485 = vpop.f32.mrb[0].mxu0
          %v2486 = vadd.f32 %v2322, %v2485
          %v2487 = vpop.f32.mrb[0].mxu0
          %2488 = vmatprep.mubr.f32.mxu0 0.0
          %2489 = vmatmul.mubr.f32.gmra.mrb[0].mxu0 %v2289
          %v2490 = vpop.f32.mrb[0].mxu0
          %v2491 = vadd.f32 %v2322, %v2490
          %v2492 = vpop.f32.mrb[0].mxu0
          %2493 = vmatprep.mubr.f32.mxu0 0.0
          %2494 = vmatmul.mubr.f32.gmra.mrb[0].mxu0 %v2290
          %v2495 = vpop.f32.mrb[0].mxu0
          %v2496 = vadd.f32 %v2322, %v2495
          %v2497 = vpop.f32.mrb[0].mxu0
          %2498 = vmatprep.mubr.f32.mxu0 0.0
          %2499 = vmatmul.mubr.f32.gmra.mrb[0].mxu0 %v2291
          %v2500 = vpop.f32.mrb[0].mxu0
          %v2501 = vadd.f32 %v2322, %v2500
          %v2502 = vpop.f32.mrb[0].mxu0
          %2503 = vmatprep.mubr.f32.mxu0 0.0
          %2504 = vmatmul.mubr.f32.gmra.mrb[0].mxu0 %v2292
          %v2505 = vpop.f32.mrb[0].mxu0
          %v2506 = vadd.f32 %v2322, %v2505
          %v2507 = vpop.f32.mrb[0].mxu0
          %2508 = vmatprep.mubr.f32.mxu0 0.0
          %2509 = vmatmul.mubr.f32.gmra.mrb[0].mxu0 %v2293
          %v2510 = vpop.f32.mrb[0].mxu0
          %v2511 = vadd.f32 %v2322, %v2510
          %v2512 = vpop.f32.mrb[0].mxu0
          %2513 = vmatprep.mubr.f32.mxu0 0.0
          %2514 = vmatmul.mubr.f32.gmra.mrb[0].mxu0 %v2294
          %v2515 = vpop.f32.mrb[0].mxu0
          %v2516 = vadd.f32 %v2322, %v2515
          %v2517 = vpop.f32.mrb[0].mxu0
          %2518 = vmatprep.mubr.f32.mxu0 0.0
          %2519 = vmatmul.mubr.f32.gmra.mrb[0].mxu0 %v2295
          %v2520 = vpop.f32.mrb[0].mxu0
          %v2521 = vadd.f32 %v2322, %v2520
          %v2522 = vpop.f32.mrb[0].mxu0
          %2523 = vmatprep.mubr.f32.mxu0 0.0
          %2524 = vmatmul.mubr.f32.gmra.mrb[0].mxu0 %v2296
          %v2525 = vpop.f32.mrb[0].mxu0
          %v2526 = vadd.f32 %v2322, %v2525
          %v2527 = vpop.f32.mrb[0].mxu0
          %2528 = vmatprep.mubr.f32.mxu0 0.0
          %2529 = vmatmul.mubr.f32.gmra.mrb[0].mxu0 %v2297
          %v2530 = vpop.f32.mrb[0].mxu0
          %v2531 = vadd.f32 %v2322, %v2530
          %v2532 = vpop.f32.mrb[0].mxu0
          %2533 = vmatprep.mubr.f32.mxu0 0.0
          %2534 = vmatmul.mubr.f32.gmra.mrb[0].mxu0 %v2298
          %v2535 = vpop.f32.mrb[0].mxu0
          %v2536 = vadd.f32 %v2322, %v2535
          %v2537 = vpop.f32.mrb[0].mxu0
          %2538 = vmatprep.mubr.f32.mxu0 0.0
          %2539 = vmatmul.mubr.f32.gmra.mrb[0].mxu0 %v2299
          %v2540 = vpop.f32.mrb[0].mxu0
          %v2541 = vadd.f32 %v2322, %v2540
          %v2542 = vpop.f32.mrb[0].mxu0
          %2543 = vmatprep.mubr.f32.mxu0 0.0
          %2544 = vmatmul.mubr.f32.gmra.mrb[0].mxu0 %v2300
          %v2545 = vpop.f32.mrb[0].mxu0
          %v2546 = vadd.f32 %v2322, %v2545
          %v2547 = vpop.f32.mrb[0].mxu0
          %2548 = vdwg.mxu0
          %2549 = vst [vmem:[#allocation14] sm:$0xff] %v2391
          %2550 = vst [vmem:[#allocation14 + $0x8] sm:$0xff] %v2396
          %2551 = vst [vmem:[#allocation14 + $0x10] sm:$0xff] %v2401
          %2552 = vst [vmem:[#allocation14 + $0x18] sm:$0xff] %v2406
          %2553 = vst [vmem:[#allocation14 + $0x20] sm:$0xff] %v2411
          %2554 = vst [vmem:[#allocation14 + $0x28] sm:$0xff] %v2416
          %2555 = vst [vmem:[#allocation14 + $0x30] sm:$0xff] %v2421
          %2556 = vst [vmem:[#allocation14 + $0x38] sm:$0xff] %v2426
          %2557 = vst [vmem:[#allocation14 + $0x40] sm:$0xff] %v2431
          %2558 = vst [vmem:[#allocation14 + $0x48] sm:$0xff] %v2436
          %2559 = vst [vmem:[#allocation14 + $0x50] sm:$0xff] %v2441
          %2560 = vst [vmem:[#allocation14 + $0x58] sm:$0xff] %v2446
          %2561 = vst [vmem:[#allocation14 + $0x60] sm:$0xff] %v2451
          %2562 = vst [vmem:[#allocation14 + $0x68] sm:$0xff] %v2456
          %2563 = vst [vmem:[#allocation14 + $0x70] sm:$0xff] %v2461
          %2564 = vst [vmem:[#allocation14 + $0x78] sm:$0xff] %v2466
          %2565 = vst [vmem:[#allocation14 + $0x80] sm:$0xff] %v2471
          %2566 = vst [vmem:[#allocation14 + $0x88] sm:$0xff] %v2476
          %2567 = vst [vmem:[#allocation14 + $0x90] sm:$0xff] %v2481
          %2568 = vst [vmem:[#allocation14 + $0x98] sm:$0xff] %v2486
          %2569 = vst [vmem:[#allocation14 + $0xa0] sm:$0xff] %v2491
          %2570 = vst [vmem:[#allocation14 + $0xa8] sm:$0xff] %v2496
          %2571 = vst [vmem:[#allocation14 + $0xb0] sm:$0xff] %v2501
          %2572 = vst [vmem:[#allocation14 + $0xb8] sm:$0xff] %v2506
          %2573 = vst [vmem:[#allocation14 + $0xc0] sm:$0xff] %v2511
          %2574 = vst [vmem:[#allocation14 + $0xc8] sm:$0xff] %v2516
          %2575 = vst [vmem:[#allocation14 + $0xd0] sm:$0xff] %v2521
          %2576 = vst [vmem:[#allocation14 + $0xd8] sm:$0xff] %v2526
          %2577 = vst [vmem:[#allocation14 + $0xe0] sm:$0xff] %v2531
          %2578 = vst [vmem:[#allocation14 + $0xe8] sm:$0xff] %v2536
          %2579 = vst [vmem:[#allocation14 + $0xf0] sm:$0xff] %v2541
          %2580 = vst [vmem:[#allocation14 + $0xf8] sm:$0xff] %v2546
        $region84: #{block2d_forward.1} parent=47 // pred_fallthru
          _
        // Predicated region
        $region85: #{block2d_forward.1} parent=47 // pred_check
          %p2581 = pneg %p190
        $region86: #{block2d_forward.1} parent=47 // pred_check_branch
          %2583 = sbr.rel (%p2581) target = $region88
        $region87: #{block2d_forward.1} parent=47 // pred_region
          %s2585 = ssub.s32 4096, 4096
          %2586 = vsyncadd [#allocation4], %s2585
          %s2587 = sshll.u32 [#allocation14], 4
          %s2588 = int_to_ptr.vmem [resolvable:$true] %s2587
          %2593 = dma.vmem_to_hbm [thread:$0]  %s2588, 4096, %s7, [#allocation4], 128, 128, 8
        $region88: #{block2d_forward.1} parent=47 // pred_fallthru
          _
        // Predicated region
        $region89: #{block2d_forward.1} parent=47 // pred_check
          %p2594 = pneg %p190
        $region90: #{block2d_forward.1} parent=47 // pred_check_branch
          %2596 = sbr.rel (%p2594) target = $region92
        $region91: #{block2d_forward.1} parent=47 // pred_region
          %2597 = dma.done [#allocation4], 4096
        $region92: #{block2d_forward.1} parent=47 // pred_fallthru
          _
      $region48: #{block2d_forward.1} parent=5 // pred_fallthru
        _
      %p2598 = scmp.le.s32.totalorder 2, %s20
      // Predicated region
      $region93: #{block2d_forward.1} parent=5 // pred_check
        %p2599 = pneg %p2598
      $region94: #{block2d_forward.1} parent=5 // pred_check_branch
        %2601 = sbr.rel (%p2599) target = $region96
      $region95: #{block2d_forward.1} parent=5 // pred_region
        %s2602 = ssub.s32 %s20, 2
      $region96: #{block2d_forward.1} parent=5 // pred_fallthru
        _
    $region6: #{block2d_forward.1} parent=1 // loop_footer
      %s24 = sadd.s32 1, %s20
    $region7: #{block2d_forward.1} parent=1 // loop_footer_branch
      %19 = sbr.rel target = $region3
    $region8: #{block2d_forward.1} parent=1 // loop_exit
      _
    %2603 = vsyncpa [#allocation3], 1
    %s2604 = scalar_lea.sflag [#allocation3], 1
    %2605 = vsyncpa %s2604, 1
    %2606 = vsyncpa [#allocation6], 1
    %2607 = vsyncpa [#allocation9], 1
    %2608 = vsyncpa [#allocation12], 1
    %2609 = vsyncpa [#allocation4], 1
    %s2610 = scalar_lea.sflag [#allocation4], 1
    %2611 = vsyncpa %s2610, 1

</llo_original>
